<compile_context>
chip_gen: v6e
topology: v6e:2x2x1
jax: 0.10.0
libtpu: 0.0.40
codegen_flags: <defaults>
</compile_context>

<pallas_src>
import functools

import jax
import jax.numpy as jnp
from jax.experimental import pallas as pl
from jax.experimental.pallas import tpu as pltpu


def _manager_fwd_kernel(task_ref, x_ref, w1_ref, b1_ref, w2_ref, b2_ref, o_ref):
    # task_ref is the scalar-prefetch ref; head selection already happened in
    # the w2/b2 index_maps, so it is unused in the body.
    del task_ref
    # Backbone stand-in: h = relu(x @ W1 + b1)   (bf16 MXU, f32 accumulate)
    h = jnp.dot(x_ref[...], w1_ref[...], preferred_element_type=jnp.float32)
    h = jnp.maximum(h + b1_ref[...], 0.0)
    # Prediction head for the selected task: logits = h @ W2[task] + b2[task]
    # (w2_ref / b2_ref are already 2-D: task dim squeezed via pl.Squeezed()).
    logits = jnp.dot(h.astype(jnp.bfloat16), w2_ref[...],
                     preferred_element_type=jnp.float32)
    o_ref[...] = (logits + b2_ref[...]).astype(o_ref.dtype)


@functools.partial(jax.jit, static_argnames=("tb",))
def manager_forward(task_idx, x, w1, b1, w2_stacked, b2_stacked, *, tb=256):
    """logits = Linear_task( relu( Linear_backbone(x) ) ), all heads fused.

    task_idx   : (1,)            int32    task selector (scalar-prefetched)
    x          : (B, D_IN)       bfloat16
    w1         : (D_IN, H)       bfloat16 backbone weight (in, out), H lane-padded
    b1         : (1, H)          float32
    w2_stacked : (T, H, NCLS_P)  bfloat16 all task heads, NCLS_P lane-padded
    b2_stacked : (T, 1, NCLS_P)  float32
    returns (B, NCLS_P) float32 logits (pad columns are exactly zero; slice the
    real n_class columns outside).
    """
    B, D_IN = x.shape
    H = w1.shape[1]
    T = w2_stacked.shape[0]
    NCLS_P = w2_stacked.shape[2]

    # Batch tile: prefer a single step / M>=256 when possible (overhead-bound
    # regime at small B; fills the 2x256x256 MXU on v6e/v7x); always a
    # 128-multiple so v5e's 128^2 MXU stays full.
    tb = min(tb, B)
    assert B % tb == 0, "batch must be a multiple of the batch tile"
    n_blocks = B // tb

    # Robustness: clamp the head selector so an out-of-range task can never
    # drive the w2/b2 DMA past the stacked-head array.
    task_idx = jnp.clip(task_idx.astype(jnp.int32), 0, T - 1)

    return pl.pallas_call(
        _manager_fwd_kernel,
        out_shape=jax.ShapeDtypeStruct((B, NCLS_P), jnp.float32),
        grid_spec=pltpu.PrefetchScalarGridSpec(
            num_scalar_prefetch=1,
            grid=(n_blocks,),
            in_specs=[
                # batch tile moves with the grid; weights stay VMEM-resident
                pl.BlockSpec((tb, D_IN), lambda i, t: (i, 0)),
                pl.BlockSpec((D_IN, H), lambda i, t: (0, 0)),
                pl.BlockSpec((1, H), lambda i, t: (0, 0)),
                # head selection happens in the DMA index_map (scalar prefetch);
                # leading task dim is squeezed so the kernel sees 2-D refs.
                pl.BlockSpec((pl.Squeezed(), H, NCLS_P), lambda i, t: (t[0], 0, 0)),
                pl.BlockSpec((pl.Squeezed(), 1, NCLS_P), lambda i, t: (t[0], 0, 0)),
            ],
            out_specs=pl.BlockSpec((tb, NCLS_P), lambda i, t: (i, 0)),
        ),
        compiler_params=pltpu.CompilerParams(
            # Megacore sharding of the batch axis when n_blocks > 1 (v7x);
            # harmless no-op for grid=(1,).
            dimension_semantics=("parallel",),
        ),
    )(task_idx, x, w1, b1, w2_stacked, b2_stacked)


def _uniform_linear_init(key, fan_in, fan_out):
    """Deterministic PyTorch-style Linear init: U(-1/sqrt(fan_in), 1/sqrt(fan_in))."""
    kw, kb = jax.random.split(key)
    bound = 1.0 / jnp.sqrt(jnp.float32(fan_in))
    w = jax.random.uniform(kw, (fan_in, fan_out), jnp.float32, -bound, bound)
    b = jax.random.uniform(kb, (1, fan_out), jnp.float32, -bound, bound)
    return w, b


if __name__ == "__main__":
    # Small but MXU/lane-friendly shapes.
    B = 256            # batch -> single grid step with TB=256
    TB = 256           # batch tile (grid collapses to (1,); overhead-bound regime)
    D_IN = 128         # raw input feature dim fed to the backbone stand-in
    H_RAW = 1000       # Manager hard-codes Linear(1000, n_class)
    H = 1024           # hidden dim zero-padded to a lane multiple
    taskcla = [(0, 10), (1, 10)]   # class-incremental: one head per task
    NCLS_PAD = 128     # lane-dense padded n_class
    task = 1
    ncls = taskcla[task][1]

    key = jax.random.PRNGKey(0)
    k_x, k_arch, k_heads = jax.random.split(key, 3)

    # Inputs (the "features" argument of forward()).
    x = jax.random.normal(k_x, (B, D_IN), jnp.float32)

    # Backbone stand-in parameters (raw H_RAW=1000, then zero-pad to H=1024).
    w1_raw, b1_raw = _uniform_linear_init(k_arch, D_IN, H_RAW)
    w1 = jnp.zeros((D_IN, H), jnp.float32).at[:, :H_RAW].set(w1_raw)
    b1 = jnp.zeros((1, H), jnp.float32).at[:, :H_RAW].set(b1_raw)

    # Prediction heads: self.predict = ModuleList([Linear(1000, n_class), ...])
    # Stack all heads into one tensor, zero-padding rows (H) and cols (n_class).
    head_keys = jax.random.split(k_heads, len(taskcla))
    w2_list, b2_list = [], []
    for (_, nc), hk in zip(taskcla, head_keys):
        w2_raw, b2_raw = _uniform_linear_init(hk, H_RAW, nc)
        w2_list.append(
            jnp.zeros((H, NCLS_PAD), jnp.float32).at[:H_RAW, :nc].set(w2_raw))
        b2_list.append(
            jnp.zeros((1, NCLS_PAD), jnp.float32).at[:, :nc].set(b2_raw))
    w2_stacked = jnp.stack(w2_list, axis=0)            # (T, H, NCLS_PAD)
    b2_stacked = jnp.stack(b2_list, axis=0)            # (T, 1, NCLS_PAD)

    # bf16 for the memory-bound weight/activation traffic; biases stay f32.
    x_bf = x.astype(jnp.bfloat16)
    w1_bf = w1.astype(jnp.bfloat16)
    w2_bf = w2_stacked.astype(jnp.bfloat16)

    task_idx = jnp.array([task], dtype=jnp.int32)

    logits_full = manager_forward(task_idx, x_bf, w1_bf, b1, w2_bf, b2_stacked,
                                  tb=TB)
    logits_full = jax.block_until_ready(logits_full)
    logits = logits_full[:, :ncls]

    # Pure-JAX reference following the same bf16-compute / f32-accumulate path.
    h_ref = jnp.maximum(
        jnp.dot(x_bf, w1_bf, preferred_element_type=jnp.float32) + b1, 0.0)
    ref_full = jnp.dot(h_ref.astype(jnp.bfloat16), w2_bf[task],
                       preferred_element_type=jnp.float32) + b2_stacked[task]
    ref = ref_full[:, :ncls]

    assert logits.shape == (B, ncls)
    assert jnp.allclose(logits, ref, atol=1e-2, rtol=1e-2)

    print("KERNEL_OK")
</pallas_src>

<mosaic_0001>
module attributes {stable_mosaic.version = 11 : i64} {
  func.func @_manager_fwd_kernel(%arg0: i32, %arg1: memref<1xi32, #tpu.memory_space<smem>>, %arg2: memref<256x128xbf16, #tpu.memory_space<vmem>>, %arg3: memref<128x1024xbf16, #tpu.memory_space<vmem>>, %arg4: memref<1x1024xf32, #tpu.memory_space<vmem>>, %arg5: memref<1x1024x128xbf16, #tpu.memory_space<vmem>>, %arg6: memref<1x1x128xf32, #tpu.memory_space<vmem>>, %arg7: memref<256x128xf32, #tpu.memory_space<vmem>>) attributes {dimension_semantics = [#tpu.dimension_semantics<parallel>], iteration_bounds = array<i64: 1>, scalar_prefetch = 1 : i64, scratch_operands = 0 : i64, tpu.core_type = #tpu.core_type<tc>, window_params = [{transform_indices = @transform_0, window_bounds = array<i64: 256, 128>}, {pipeline_mode = #tpu.pipeline_mode<synchronous>, transform_indices = @transform_1, window_bounds = array<i64: 128, 1024>}, {pipeline_mode = #tpu.pipeline_mode<synchronous>, transform_indices = @transform_2, window_bounds = array<i64: 1, 1024>}, {transform_indices = @transform_3, window_bounds = array<i64: 1, 1024, 128>}, {transform_indices = @transform_4, window_bounds = array<i64: 1, 1, 128>}, {transform_indices = @transform_5, window_bounds = array<i64: 256, 128>}]} {
    %c0 = arith.constant 0 : index
    %c0_0 = arith.constant 0 : index
    %0 = vector.load %arg2[%c0, %c0_0] : memref<256x128xbf16, #tpu.memory_space<vmem>>, vector<256x128xbf16>
    %c0_1 = arith.constant 0 : index
    %c0_2 = arith.constant 0 : index
    %1 = vector.load %arg3[%c0_1, %c0_2] : memref<128x1024xbf16, #tpu.memory_space<vmem>>, vector<128x1024xbf16>
    %cst = arith.constant dense<0.000000e+00> : vector<256x1024xf32>
    %2 = tpu.matmul %0, %1, %cst {dimension_numbers = #tpu.dot_dimension_numbers<[1], [0], [0], [1], [0, 0, 1, 1], [], []>} : vector<256x128xbf16>, vector<128x1024xbf16>, vector<256x1024xf32> -> vector<256x1024xf32>
    %c0_3 = arith.constant 0 : index
    %c0_4 = arith.constant 0 : index
    %3 = vector.load %arg4[%c0_3, %c0_4] : memref<1x1024xf32, #tpu.memory_space<vmem>>, vector<1x1024xf32>
    %4 = vector.broadcast %3 : vector<1x1024xf32> to vector<256x1024xf32>
    %5 = arith.addf %2, %4 : vector<256x1024xf32>
    %cst_5 = arith.constant 0.000000e+00 : f32
    %6 = vector.broadcast %cst_5 : f32 to vector<256x1024xf32>
    %7 = arith.maximumf %5, %6 : vector<256x1024xf32>
    %8 = arith.truncf %7 : vector<256x1024xf32> to vector<256x1024xbf16>
    %c0_6 = arith.constant 0 : index
    %c0_7 = arith.constant 0 : index
    %c0_8 = arith.constant 0 : index
    %9 = vector.load %arg5[%c0_6, %c0_7, %c0_8] : memref<1x1024x128xbf16, #tpu.memory_space<vmem>>, vector<1x1024x128xbf16>
    %10 = vector.shape_cast %9 : vector<1x1024x128xbf16> to vector<1024x128xbf16>
    %cst_9 = arith.constant dense<0.000000e+00> : vector<256x128xf32>
    %11 = tpu.matmul %8, %10, %cst_9 {dimension_numbers = #tpu.dot_dimension_numbers<[1], [0], [0], [1], [0, 0, 1, 1], [], []>} : vector<256x1024xbf16>, vector<1024x128xbf16>, vector<256x128xf32> -> vector<256x128xf32>
    %c0_10 = arith.constant 0 : index
    %c0_11 = arith.constant 0 : index
    %c0_12 = arith.constant 0 : index
    %12 = vector.load %arg6[%c0_10, %c0_11, %c0_12] : memref<1x1x128xf32, #tpu.memory_space<vmem>>, vector<1x1x128xf32>
    %13 = vector.shape_cast %12 : vector<1x1x128xf32> to vector<1x128xf32>
    %14 = vector.broadcast %13 : vector<1x128xf32> to vector<256x128xf32>
    %15 = arith.addf %11, %14 : vector<256x128xf32>
    %c0_13 = arith.constant 0 : index
    %c0_14 = arith.constant 0 : index
    %16 = vector.load %arg7[%c0_13, %c0_14] : memref<256x128xf32, #tpu.memory_space<vmem>>, vector<256x128xf32>
    tpu.vector_store %arg7[%c0_13, %c0_14], %15 {strides = array<i32>} : memref<256x128xf32, #tpu.memory_space<vmem>>, vector<256x128xf32>,
    return
  }
  func.func @transform_0(%arg0: i32, %arg1: memref<1xi32, #tpu.memory_space<smem>>) -> (i32, i32) {
    %c0_i32 = arith.constant 0 : i32
    %c0_i32_0 = arith.constant 0 : i32
    return %arg0, %c0_i32 : i32, i32
  }
  func.func @transform_1(%arg0: i32, %arg1: memref<1xi32, #tpu.memory_space<smem>>) -> (i32, i32) {
    %c0_i32 = arith.constant 0 : i32
    %c0_i32_0 = arith.constant 0 : i32
    %c0_i32_1 = arith.constant 0 : i32
    return %c0_i32, %c0_i32_0 : i32, i32
  }
  func.func @transform_2(%arg0: i32, %arg1: memref<1xi32, #tpu.memory_space<smem>>) -> (i32, i32) {
    %c0_i32 = arith.constant 0 : i32
    %c0_i32_0 = arith.constant 0 : i32
    %c0_i32_1 = arith.constant 0 : i32
    return %c0_i32, %c0_i32_0 : i32, i32
  }
  func.func @transform_3(%arg0: i32, %arg1: memref<1xi32, #tpu.memory_space<smem>>) -> (i32, i32, i32) {
    %c0 = arith.constant 0 : index
    %0 = memref.load %arg1[%c0] : memref<1xi32, #tpu.memory_space<smem>>
    %c0_i32 = arith.constant 0 : i32
    %c0_i32_0 = arith.constant 0 : i32
    %c0_i32_1 = arith.constant 0 : i32
    return %0, %c0_i32, %c0_i32_0 : i32, i32, i32
  }
  func.func @transform_4(%arg0: i32, %arg1: memref<1xi32, #tpu.memory_space<smem>>) -> (i32, i32, i32) {
    %c0 = arith.constant 0 : index
    %0 = memref.load %arg1[%c0] : memref<1xi32, #tpu.memory_space<smem>>
    %c0_i32 = arith.constant 0 : i32
    %c0_i32_0 = arith.constant 0 : i32
    %c0_i32_1 = arith.constant 0 : i32
    return %0, %c0_i32, %c0_i32_0 : i32, i32, i32
  }
  func.func @transform_5(%arg0: i32, %arg1: memref<1xi32, #tpu.memory_space<smem>>) -> (i32, i32) {
    %c0_i32 = arith.constant 0 : i32
    %c0_i32_0 = arith.constant 0 : i32
    return %arg0, %c0_i32 : i32, i32
  }
}

</mosaic_0001>

<llo_original>
// kernel: manager_forward.1
$region0: #{manager_forward.1}
  #allocation0 [shape = 'u32[]', space=smem, size = 0x4, offset = 0x4, fixed_abs, tag = 'smem constant byte address 0x4 - core index']
  #allocation1 [shape = 'u32[144,128]{1,0:T(1,128)}', space=vmem, size = 0x12000, scoped, tag = 'internal scratch']
  #allocation2 [shape = 's32[1]{0}', space=sflag, size = 0x4, scoped, tag = 'scoped memory for manager_forward.1']
  #allocation3 [shape = 's32[1]{0:T(128)S(6)}', space=smem, size = 0x200, scoped, tag = 'prefetched SMEM operand 0']
  %s0 = inlined_call_operand.<no memory space> [shape: s32[1], index: 0, kind: input, shape index: {}]
  %s1 = inlined_call_operand.hbm [shape: bf16[256,128], index: 1, kind: input, shape index: {}]
  %s2 = inlined_call_operand.hbm [shape: bf16[128,1024], index: 2, kind: input, shape index: {}]
  %s3 = inlined_call_operand.vmem [shape: f32[1,1024], index: 3, kind: input, shape index: {}]
  %s4 = inlined_call_operand.hbm [shape: bf16[2,1024,128], index: 4, kind: input, shape index: {}]
  %s5 = inlined_call_operand.vmem [shape: f32[2,1,128], index: 5, kind: input, shape index: {}]
  %s6 = inlined_call_operand.hbm [shape: f32[256,128], index: 6, kind: output, shape index: {}]
  %s7 = sld [smem:[#allocation0]]
  $region42: #{manager_forward.1} parent=0
    _
  %s9 = ssub.s32 1, %s7
  %s10 = scalar_select 0, %s9, %s7
  %11 = sst [smem:[#allocation3]] %s0
  $region1: #{manager_forward.1} parent=0
    #allocation4 [shape = 'u8[65536]{0}', space=vmem, size = 0x10000, scoped, tag = 'input window, operand 1, single buffered']
    #allocation5 [shape = 's32[1]{0}', space=sflag, size = 0x4, scoped, tag = 'scoped memory for manager_forward.1']
    #allocation6 [shape = 's32[1]{0}', space=sflag, size = 0x4, scoped, tag = 'scoped memory for manager_forward.1']
    #allocation7 [shape = 'u8[262144]{0}', space=vmem, size = 0x40000, scoped, tag = 'input window, operand 2, single buffered']
    #allocation8 [shape = 's32[1]{0}', space=sflag, size = 0x4, scoped, tag = 'scoped memory for manager_forward.1']
    #allocation9 [shape = 'u8[262144]{0}', space=vmem, size = 0x40000, scoped, tag = 'input window, operand 4, single buffered']
    #allocation10 [shape = 'u8[131072]{0}', space=vmem, size = 0x20000, scoped, tag = 'output window, operand 0, single buffered']
    %12 = vsyncpa [#allocation5], 0
    %13 = vsyncpa [#allocation8], 0
    %14 = vsyncpa [#allocation6], 0
    // Predicated region
    $region2: #{manager_forward.1} parent=1 // pred_check
      _
    $region3: #{manager_forward.1} parent=1 // pred_check_branch
      %16 = sbr.rel (0) target = $region5
    $region4: #{manager_forward.1} parent=1 // pred_region
      %s18 = ssub.s32 2048, 2048
      %19 = vsyncadd [#allocation5], %s18
      %s20 = sshll.u32 [#allocation4], 4
      %s21 = int_to_ptr.vmem [resolvable:$true] %s20
      %26 = dma.hbm_to_vmem [thread:$0]  %s1, 2048, %s21, [#allocation5], 64, 64, 4
    $region5: #{manager_forward.1} parent=1 // pred_fallthru
      _
    // Predicated region
    $region6: #{manager_forward.1} parent=1 // pred_check
      _
    $region7: #{manager_forward.1} parent=1 // pred_check_branch
      %28 = sbr.rel (0) target = $region9
    $region8: #{manager_forward.1} parent=1 // pred_region
      %s30 = ssub.s32 8192, 8192
      %31 = vsyncadd [#allocation8], %s30
      %s32 = sshll.u32 [#allocation7], 4
      %s33 = int_to_ptr.vmem [resolvable:$true] %s32
      %38 = dma.hbm_to_vmem [thread:$0]  %s2, 8192, %s33, [#allocation8], 512, 512, 32
    $region9: #{manager_forward.1} parent=1 // pred_fallthru
      _
    // Predicated region
    $region10: #{manager_forward.1} parent=1 // pred_check
      _
    $region11: #{manager_forward.1} parent=1 // pred_check_branch
      %40 = sbr.rel (0) target = $region13
    $region12: #{manager_forward.1} parent=1 // pred_region
      _
    $region13: #{manager_forward.1} parent=1 // pred_fallthru
      _
    // Predicated region
    $region14: #{manager_forward.1} parent=1 // pred_check
      _
    $region15: #{manager_forward.1} parent=1 // pred_check_branch
      %42 = sbr.rel (0) target = $region17
    $region16: #{manager_forward.1} parent=1 // pred_region
      %s43 = sld [smem:[#allocation3]]
      %s45 = ssub.s32 8192, 8192
      %46 = vsyncadd [#allocation8], %s45
      %s47 = smul.addr %s43, 128
      %s48 = smul.addr %s47, 64
      %s49 = scalar_lea.hbm %s4, %s48
      %s50 = sshll.u32 [#allocation9], 4
      %s51 = int_to_ptr.vmem [resolvable:$true] %s50
      %56 = dma.hbm_to_vmem [thread:$0]  %s49, 8192, %s51, [#allocation8], 64, 64, 4
    $region17: #{manager_forward.1} parent=1 // pred_fallthru
      _
    // Predicated region
    $region18: #{manager_forward.1} parent=1 // pred_check
      _
    $region19: #{manager_forward.1} parent=1 // pred_check_branch
      %58 = sbr.rel (0) target = $region21
    $region20: #{manager_forward.1} parent=1 // pred_region
      %s59 = sld [smem:[#allocation3]]
      %p60 = scmp.lt.s32.totalorder %s59, 1
      %s61 = scalar_select %p60, %s59, 1
      %s62 = scalar_lea.vmem %s5, %s61
      %s63 = sld [smem:[#allocation3]]
    $region21: #{manager_forward.1} parent=1 // pred_fallthru
      _
    // Predicated region
    $region22: #{manager_forward.1} parent=1 // pred_check
      _
    $region23: #{manager_forward.1} parent=1 // pred_check_branch
      %65 = sbr.rel (0) target = $region25
    $region24: #{manager_forward.1} parent=1 // pred_region
      %66 = dma.done [#allocation5], 2048
    $region25: #{manager_forward.1} parent=1 // pred_fallthru
      _
    // Predicated region
    $region26: #{manager_forward.1} parent=1 // pred_check
      _
    $region27: #{manager_forward.1} parent=1 // pred_check_branch
      %68 = sbr.rel (0) target = $region29
    $region28: #{manager_forward.1} parent=1 // pred_region
      %69 = dma.done [#allocation8], 8192
    $region29: #{manager_forward.1} parent=1 // pred_fallthru
      _
    // Predicated region
    $region30: #{manager_forward.1} parent=1 // pred_check
      _
    $region31: #{manager_forward.1} parent=1 // pred_check_branch
      %71 = sbr.rel (0) target = $region33
    $region32: #{manager_forward.1} parent=1 // pred_region
      %72 = dma.done [#allocation8], 8192
    $region33: #{manager_forward.1} parent=1 // pred_fallthru
      _
    %s73 = sld [smem:[#allocation3]]
    %p74 = scmp.lt.s32.totalorder %s73, 1
    %s75 = scalar_select %p74, %s73, 1
    %s76 = scalar_lea.vmem %s5, %s75
    %s77 = sld [smem:[#allocation3]]
    %s78 = sld [smem:[#allocation3]]
    %p79 = scmp.lt.s32.totalorder %s78, 1
    %s80 = scalar_select %p79, %s78, 1
    %s81 = scalar_lea.vmem %s5, %s80
    %s82 = sld [smem:[#allocation3]]
    %v84 = vld [vmem:[#allocation4] sm:$0xf]
    %v85 = vld [vmem:[#allocation4 + $0x4] sm:$0xf]
    %v86 = vld [vmem:[#allocation4 + $0x8] sm:$0xf]
    %v87 = vld [vmem:[#allocation4 + $0xc] sm:$0xf]
    %v88 = vld [vmem:[#allocation4 + $0x10] sm:$0xf]
    %v89 = vld [vmem:[#allocation4 + $0x14] sm:$0xf]
    %v90 = vld [vmem:[#allocation4 + $0x18] sm:$0xf]
    %v91 = vld [vmem:[#allocation4 + $0x1c] sm:$0xf]
    %v92 = vld [vmem:[#allocation4 + $0x20] sm:$0xf]
    %v93 = vld [vmem:[#allocation4 + $0x24] sm:$0xf]
    %v94 = vld [vmem:[#allocation4 + $0x28] sm:$0xf]
    %v95 = vld [vmem:[#allocation4 + $0x2c] sm:$0xf]
    %v96 = vld [vmem:[#allocation4 + $0x30] sm:$0xf]
    %v97 = vld [vmem:[#allocation4 + $0x34] sm:$0xf]
    %v98 = vld [vmem:[#allocation4 + $0x38] sm:$0xf]
    %v99 = vld [vmem:[#allocation4 + $0x3c] sm:$0xf]
    %v100 = vld [vmem:[#allocation4 + $0x40] sm:$0xf]
    %v101 = vld [vmem:[#allocation4 + $0x44] sm:$0xf]
    %v102 = vld [vmem:[#allocation4 + $0x48] sm:$0xf]
    %v103 = vld [vmem:[#allocation4 + $0x4c] sm:$0xf]
    %v104 = vld [vmem:[#allocation4 + $0x50] sm:$0xf]
    %v105 = vld [vmem:[#allocation4 + $0x54] sm:$0xf]
    %v106 = vld [vmem:[#allocation4 + $0x58] sm:$0xf]
    %v107 = vld [vmem:[#allocation4 + $0x5c] sm:$0xf]
    %v108 = vld [vmem:[#allocation4 + $0x60] sm:$0xf]
    %v109 = vld [vmem:[#allocation4 + $0x64] sm:$0xf]
    %v110 = vld [vmem:[#allocation4 + $0x68] sm:$0xf]
    %v111 = vld [vmem:[#allocation4 + $0x6c] sm:$0xf]
    %v112 = vld [vmem:[#allocation4 + $0x70] sm:$0xf]
    %v113 = vld [vmem:[#allocation4 + $0x74] sm:$0xf]
    %v114 = vld [vmem:[#allocation4 + $0x78] sm:$0xf]
    %v115 = vld [vmem:[#allocation4 + $0x7c] sm:$0xf]
    %v116 = vld [vmem:[#allocation7] sm:$0xff]
    %v117 = vld [vmem:[#allocation7 + $0x8] sm:$0xff]
    %v118 = vld [vmem:[#allocation7 + $0x10] sm:$0xff]
    %v119 = vld [vmem:[#allocation7 + $0x18] sm:$0xff]
    %v120 = vld [vmem:[#allocation7 + $0x20] sm:$0xff]
    %v121 = vld [vmem:[#allocation7 + $0x28] sm:$0xff]
    %v122 = vld [vmem:[#allocation7 + $0x30] sm:$0xff]
    %v123 = vld [vmem:[#allocation7 + $0x38] sm:$0xff]
    %v124 = vld [vmem:[#allocation7 + $0x40] sm:$0xff]
    %v125 = vld [vmem:[#allocation7 + $0x48] sm:$0xff]
    %v126 = vld [vmem:[#allocation7 + $0x50] sm:$0xff]
    %v127 = vld [vmem:[#allocation7 + $0x58] sm:$0xff]
    %v128 = vld [vmem:[#allocation7 + $0x60] sm:$0xff]
    %v129 = vld [vmem:[#allocation7 + $0x68] sm:$0xff]
    %v130 = vld [vmem:[#allocation7 + $0x70] sm:$0xff]
    %v131 = vld [vmem:[#allocation7 + $0x78] sm:$0xff]
    %v132 = vld [vmem:[#allocation7 + $0x80] sm:$0xff]
    %v133 = vld [vmem:[#allocation7 + $0x88] sm:$0xff]
    %v134 = vld [vmem:[#allocation7 + $0x90] sm:$0xff]
    %v135 = vld [vmem:[#allocation7 + $0x98] sm:$0xff]
    %v136 = vld [vmem:[#allocation7 + $0xa0] sm:$0xff]
    %v137 = vld [vmem:[#allocation7 + $0xa8] sm:$0xff]
    %v138 = vld [vmem:[#allocation7 + $0xb0] sm:$0xff]
    %v139 = vld [vmem:[#allocation7 + $0xb8] sm:$0xff]
    %v140 = vld [vmem:[#allocation7 + $0xc0] sm:$0xff]
    %v141 = vld [vmem:[#allocation7 + $0xc8] sm:$0xff]
    %v142 = vld [vmem:[#allocation7 + $0xd0] sm:$0xff]
    %v143 = vld [vmem:[#allocation7 + $0xd8] sm:$0xff]
    %v144 = vld [vmem:[#allocation7 + $0xe0] sm:$0xff]
    %v145 = vld [vmem:[#allocation7 + $0xe8] sm:$0xff]
    %v146 = vld [vmem:[#allocation7 + $0xf0] sm:$0xff]
    %v147 = vld [vmem:[#allocation7 + $0xf8] sm:$0xff]
    %v148 = vld [vmem:[#allocation7 + $0x100] sm:$0xff]
    %v149 = vld [vmem:[#allocation7 + $0x108] sm:$0xff]
    %v150 = vld [vmem:[#allocation7 + $0x110] sm:$0xff]
    %v151 = vld [vmem:[#allocation7 + $0x118] sm:$0xff]
    %v152 = vld [vmem:[#allocation7 + $0x120] sm:$0xff]
    %v153 = vld [vmem:[#allocation7 + $0x128] sm:$0xff]
    %v154 = vld [vmem:[#allocation7 + $0x130] sm:$0xff]
    %v155 = vld [vmem:[#allocation7 + $0x138] sm:$0xff]
    %v156 = vld [vmem:[#allocation7 + $0x140] sm:$0xff]
    %v157 = vld [vmem:[#allocation7 + $0x148] sm:$0xff]
    %v158 = vld [vmem:[#allocation7 + $0x150] sm:$0xff]
    %v159 = vld [vmem:[#allocation7 + $0x158] sm:$0xff]
    %v160 = vld [vmem:[#allocation7 + $0x160] sm:$0xff]
    %v161 = vld [vmem:[#allocation7 + $0x168] sm:$0xff]
    %v162 = vld [vmem:[#allocation7 + $0x170] sm:$0xff]
    %v163 = vld [vmem:[#allocation7 + $0x178] sm:$0xff]
    %v164 = vld [vmem:[#allocation7 + $0x180] sm:$0xff]
    %v165 = vld [vmem:[#allocation7 + $0x188] sm:$0xff]
    %v166 = vld [vmem:[#allocation7 + $0x190] sm:$0xff]
    %v167 = vld [vmem:[#allocation7 + $0x198] sm:$0xff]
    %v168 = vld [vmem:[#allocation7 + $0x1a0] sm:$0xff]
    %v169 = vld [vmem:[#allocation7 + $0x1a8] sm:$0xff]
    %v170 = vld [vmem:[#allocation7 + $0x1b0] sm:$0xff]
    %v171 = vld [vmem:[#allocation7 + $0x1b8] sm:$0xff]
    %v172 = vld [vmem:[#allocation7 + $0x1c0] sm:$0xff]
    %v173 = vld [vmem:[#allocation7 + $0x1c8] sm:$0xff]
    %v174 = vld [vmem:[#allocation7 + $0x1d0] sm:$0xff]
    %v175 = vld [vmem:[#allocation7 + $0x1d8] sm:$0xff]
    %v176 = vld [vmem:[#allocation7 + $0x1e0] sm:$0xff]
    %v177 = vld [vmem:[#allocation7 + $0x1e8] sm:$0xff]
    %v178 = vld [vmem:[#allocation7 + $0x1f0] sm:$0xff]
    %v179 = vld [vmem:[#allocation7 + $0x1f8] sm:$0xff]
    %v180 = vld [vmem:[%s3] sm:$0xff]
    %v182 = vlaneseq
    %v183 = vshrl.u32 %v182, 7
    %v184 = vsub.s32 0, %v183
    %v185 = vrot.slane %v180, %v184
    %v186 = vlaneseq
    %v187 = vshrl.u32 %v186, 7
    %v188 = vsub.s32 1, %v187
    %v189 = vrot.slane %v180, %v188
    %v190 = vlaneseq
    %v191 = vshrl.u32 %v190, 7
    %v192 = vsub.s32 2, %v191
    %v193 = vrot.slane %v180, %v192
    %v194 = vlaneseq
    %v195 = vshrl.u32 %v194, 7
    %v196 = vsub.s32 3, %v195
    %v197 = vrot.slane %v180, %v196
    %v198 = vlaneseq
    %v199 = vshrl.u32 %v198, 7
    %v200 = vsub.s32 4, %v199
    %v201 = vrot.slane %v180, %v200
    %v202 = vlaneseq
    %v203 = vshrl.u32 %v202, 7
    %v204 = vsub.s32 5, %v203
    %v205 = vrot.slane %v180, %v204
    %v206 = vlaneseq
    %v207 = vshrl.u32 %v206, 7
    %v208 = vsub.s32 6, %v207
    %v209 = vrot.slane %v180, %v208
    %v210 = vlaneseq
    %v211 = vshrl.u32 %v210, 7
    %v212 = vsub.s32 7, %v211
    %v213 = vrot.slane %v180, %v212
    %v254 = vunpack.c.l.b16 %v84
    %v255 = vunpack.c.l.b16 %v85
    %v256 = vunpack.c.l.b16 %v86
    %v257 = vunpack.c.l.b16 %v87
    %v258 = vunpack.c.l.b16 %v88
    %v259 = vunpack.c.l.b16 %v89
    %v260 = vunpack.c.l.b16 %v90
    %v261 = vunpack.c.l.b16 %v91
    %v262 = vunpack.c.l.b16 %v92
    %v263 = vunpack.c.l.b16 %v93
    %v264 = vunpack.c.l.b16 %v94
    %v265 = vunpack.c.l.b16 %v95
    %v266 = vunpack.c.l.b16 %v96
    %v267 = vunpack.c.l.b16 %v97
    %v268 = vunpack.c.l.b16 %v98
    %v269 = vunpack.c.l.b16 %v99
    %v270 = vunpack.c.l.b16 %v100
    %v271 = vunpack.c.l.b16 %v101
    %v272 = vunpack.c.l.b16 %v102
    %v273 = vunpack.c.l.b16 %v103
    %v274 = vunpack.c.l.b16 %v104
    %v275 = vunpack.c.l.b16 %v105
    %v276 = vunpack.c.l.b16 %v106
    %v277 = vunpack.c.l.b16 %v107
    %v278 = vunpack.c.l.b16 %v108
    %v279 = vunpack.c.l.b16 %v109
    %v280 = vunpack.c.l.b16 %v110
    %v281 = vunpack.c.l.b16 %v111
    %v282 = vunpack.c.l.b16 %v112
    %v283 = vunpack.c.l.b16 %v113
    %v284 = vunpack.c.l.b16 %v114
    %v285 = vunpack.c.l.b16 %v115
    %v286 = vpack.c.b16 %v255, %v254
    %v287 = vpack.c.b16 %v257, %v256
    %v288 = vpack.c.b16 %v259, %v258
    %v289 = vpack.c.b16 %v261, %v260
    %v290 = vpack.c.b16 %v263, %v262
    %v291 = vpack.c.b16 %v265, %v264
    %v292 = vpack.c.b16 %v267, %v266
    %v293 = vpack.c.b16 %v269, %v268
    %v294 = vpack.c.b16 %v271, %v270
    %v295 = vpack.c.b16 %v273, %v272
    %v296 = vpack.c.b16 %v275, %v274
    %v297 = vpack.c.b16 %v277, %v276
    %v298 = vpack.c.b16 %v279, %v278
    %v299 = vpack.c.b16 %v281, %v280
    %v300 = vpack.c.b16 %v283, %v282
    %v301 = vpack.c.b16 %v285, %v284
    %v382 = vunpack.c.l.b16 %v116
    %v383 = vunpack.c.h.b16 %v116
    %v384 = vunpack.c.l.b16 %v117
    %v385 = vunpack.c.h.b16 %v117
    %v386 = vunpack.c.l.b16 %v118
    %v387 = vunpack.c.h.b16 %v118
    %v388 = vunpack.c.l.b16 %v119
    %v389 = vunpack.c.h.b16 %v119
    %v390 = vunpack.c.l.b16 %v120
    %v391 = vunpack.c.h.b16 %v120
    %v392 = vunpack.c.l.b16 %v121
    %v393 = vunpack.c.h.b16 %v121
    %v394 = vunpack.c.l.b16 %v122
    %v395 = vunpack.c.h.b16 %v122
    %v396 = vunpack.c.l.b16 %v123
    %v397 = vunpack.c.h.b16 %v123
    %v398 = vunpack.c.l.b16 %v124
    %v399 = vunpack.c.h.b16 %v124
    %v400 = vunpack.c.l.b16 %v125
    %v401 = vunpack.c.h.b16 %v125
    %v402 = vunpack.c.l.b16 %v126
    %v403 = vunpack.c.h.b16 %v126
    %v404 = vunpack.c.l.b16 %v127
    %v405 = vunpack.c.h.b16 %v127
    %v406 = vunpack.c.l.b16 %v128
    %v407 = vunpack.c.h.b16 %v128
    %v408 = vunpack.c.l.b16 %v129
    %v409 = vunpack.c.h.b16 %v129
    %v410 = vunpack.c.l.b16 %v130
    %v411 = vunpack.c.h.b16 %v130
    %v412 = vunpack.c.l.b16 %v131
    %v413 = vunpack.c.h.b16 %v131
    %v414 = vunpack.c.l.b16 %v132
    %v415 = vunpack.c.h.b16 %v132
    %v416 = vunpack.c.l.b16 %v133
    %v417 = vunpack.c.h.b16 %v133
    %v418 = vunpack.c.l.b16 %v134
    %v419 = vunpack.c.h.b16 %v134
    %v420 = vunpack.c.l.b16 %v135
    %v421 = vunpack.c.h.b16 %v135
    %v422 = vunpack.c.l.b16 %v136
    %v423 = vunpack.c.h.b16 %v136
    %v424 = vunpack.c.l.b16 %v137
    %v425 = vunpack.c.h.b16 %v137
    %v426 = vunpack.c.l.b16 %v138
    %v427 = vunpack.c.h.b16 %v138
    %v428 = vunpack.c.l.b16 %v139
    %v429 = vunpack.c.h.b16 %v139
    %v430 = vunpack.c.l.b16 %v140
    %v431 = vunpack.c.h.b16 %v140
    %v432 = vunpack.c.l.b16 %v141
    %v433 = vunpack.c.h.b16 %v141
    %v434 = vunpack.c.l.b16 %v142
    %v435 = vunpack.c.h.b16 %v142
    %v436 = vunpack.c.l.b16 %v143
    %v437 = vunpack.c.h.b16 %v143
    %v438 = vunpack.c.l.b16 %v144
    %v439 = vunpack.c.h.b16 %v144
    %v440 = vunpack.c.l.b16 %v145
    %v441 = vunpack.c.h.b16 %v145
    %v442 = vunpack.c.l.b16 %v146
    %v443 = vunpack.c.h.b16 %v146
    %v444 = vunpack.c.l.b16 %v147
    %v445 = vunpack.c.h.b16 %v147
    %v446 = vunpack.c.l.b16 %v148
    %v447 = vunpack.c.h.b16 %v148
    %v448 = vunpack.c.l.b16 %v149
    %v449 = vunpack.c.h.b16 %v149
    %v450 = vunpack.c.l.b16 %v150
    %v451 = vunpack.c.h.b16 %v150
    %v452 = vunpack.c.l.b16 %v151
    %v453 = vunpack.c.h.b16 %v151
    %v454 = vunpack.c.l.b16 %v152
    %v455 = vunpack.c.h.b16 %v152
    %v456 = vunpack.c.l.b16 %v153
    %v457 = vunpack.c.h.b16 %v153
    %v458 = vunpack.c.l.b16 %v154
    %v459 = vunpack.c.h.b16 %v154
    %v460 = vunpack.c.l.b16 %v155
    %v461 = vunpack.c.h.b16 %v155
    %v462 = vunpack.c.l.b16 %v156
    %v463 = vunpack.c.h.b16 %v156
    %v464 = vunpack.c.l.b16 %v157
    %v465 = vunpack.c.h.b16 %v157
    %v466 = vunpack.c.l.b16 %v158
    %v467 = vunpack.c.h.b16 %v158
    %v468 = vunpack.c.l.b16 %v159
    %v469 = vunpack.c.h.b16 %v159
    %v470 = vunpack.c.l.b16 %v160
    %v471 = vunpack.c.h.b16 %v160
    %v472 = vunpack.c.l.b16 %v161
    %v473 = vunpack.c.h.b16 %v161
    %v474 = vunpack.c.l.b16 %v162
    %v475 = vunpack.c.h.b16 %v162
    %v476 = vunpack.c.l.b16 %v163
    %v477 = vunpack.c.h.b16 %v163
    %v478 = vunpack.c.l.b16 %v164
    %v479 = vunpack.c.h.b16 %v164
    %v480 = vunpack.c.l.b16 %v165
    %v481 = vunpack.c.h.b16 %v165
    %v482 = vunpack.c.l.b16 %v166
    %v483 = vunpack.c.h.b16 %v166
    %v484 = vunpack.c.l.b16 %v167
    %v485 = vunpack.c.h.b16 %v167
    %v486 = vunpack.c.l.b16 %v168
    %v487 = vunpack.c.h.b16 %v168
    %v488 = vunpack.c.l.b16 %v169
    %v489 = vunpack.c.h.b16 %v169
    %v490 = vunpack.c.l.b16 %v170
    %v491 = vunpack.c.h.b16 %v170
    %v492 = vunpack.c.l.b16 %v171
    %v493 = vunpack.c.h.b16 %v171
    %v494 = vunpack.c.l.b16 %v172
    %v495 = vunpack.c.h.b16 %v172
    %v496 = vunpack.c.l.b16 %v173
    %v497 = vunpack.c.h.b16 %v173
    %v498 = vunpack.c.l.b16 %v174
    %v499 = vunpack.c.h.b16 %v174
    %v500 = vunpack.c.l.b16 %v175
    %v501 = vunpack.c.h.b16 %v175
    %v502 = vunpack.c.l.b16 %v176
    %v503 = vunpack.c.h.b16 %v176
    %v504 = vunpack.c.l.b16 %v177
    %v505 = vunpack.c.h.b16 %v177
    %v506 = vunpack.c.l.b16 %v178
    %v507 = vunpack.c.h.b16 %v178
    %v508 = vunpack.c.l.b16 %v179
    %v509 = vunpack.c.h.b16 %v179
    %v510 = vpack.c.b16 %v390, %v382
    %v511 = vpack.c.b16 %v391, %v383
    %v512 = vpack.c.b16 %v392, %v384
    %v513 = vpack.c.b16 %v393, %v385
    %v514 = vpack.c.b16 %v394, %v386
    %v515 = vpack.c.b16 %v395, %v387
    %v516 = vpack.c.b16 %v396, %v388
    %v517 = vpack.c.b16 %v397, %v389
    %v518 = vpack.c.b16 %v406, %v398
    %v519 = vpack.c.b16 %v407, %v399
    %v520 = vpack.c.b16 %v408, %v400
    %v521 = vpack.c.b16 %v409, %v401
    %v522 = vpack.c.b16 %v410, %v402
    %v523 = vpack.c.b16 %v411, %v403
    %v524 = vpack.c.b16 %v412, %v404
    %v525 = vpack.c.b16 %v413, %v405
    %v526 = vpack.c.b16 %v422, %v414
    %v527 = vpack.c.b16 %v423, %v415
    %v528 = vpack.c.b16 %v424, %v416
    %v529 = vpack.c.b16 %v425, %v417
    %v530 = vpack.c.b16 %v426, %v418
    %v531 = vpack.c.b16 %v427, %v419
    %v532 = vpack.c.b16 %v428, %v420
    %v533 = vpack.c.b16 %v429, %v421
    %v534 = vpack.c.b16 %v438, %v430
    %v535 = vpack.c.b16 %v439, %v431
    %v536 = vpack.c.b16 %v440, %v432
    %v537 = vpack.c.b16 %v441, %v433
    %v538 = vpack.c.b16 %v442, %v434
    %v539 = vpack.c.b16 %v443, %v435
    %v540 = vpack.c.b16 %v444, %v436
    %v541 = vpack.c.b16 %v445, %v437
    %v542 = vpack.c.b16 %v454, %v446
    %v543 = vpack.c.b16 %v455, %v447
    %v544 = vpack.c.b16 %v456, %v448
    %v545 = vpack.c.b16 %v457, %v449
    %v546 = vpack.c.b16 %v458, %v450
    %v547 = vpack.c.b16 %v459, %v451
    %v548 = vpack.c.b16 %v460, %v452
    %v549 = vpack.c.b16 %v461, %v453
    %v550 = vpack.c.b16 %v470, %v462
    %v551 = vpack.c.b16 %v471, %v463
    %v552 = vpack.c.b16 %v472, %v464
    %v553 = vpack.c.b16 %v473, %v465
    %v554 = vpack.c.b16 %v474, %v466
    %v555 = vpack.c.b16 %v475, %v467
    %v556 = vpack.c.b16 %v476, %v468
    %v557 = vpack.c.b16 %v477, %v469
    %v558 = vpack.c.b16 %v486, %v478
    %v559 = vpack.c.b16 %v487, %v479
    %v560 = vpack.c.b16 %v488, %v480
    %v561 = vpack.c.b16 %v489, %v481
    %v562 = vpack.c.b16 %v490, %v482
    %v563 = vpack.c.b16 %v491, %v483
    %v564 = vpack.c.b16 %v492, %v484
    %v565 = vpack.c.b16 %v493, %v485
    %v566 = vpack.c.b16 %v502, %v494
    %v567 = vpack.c.b16 %v503, %v495
    %v568 = vpack.c.b16 %v504, %v496
    %v569 = vpack.c.b16 %v505, %v497
    %v570 = vpack.c.b16 %v506, %v498
    %v571 = vpack.c.b16 %v507, %v499
    %v572 = vpack.c.b16 %v508, %v500
    %v573 = vpack.c.b16 %v509, %v501
    %638 = vmatprep.subr.bf16.mxu0 %v567
    %639 = vmatpush1.bf16.msra.mxu0 %v566
    %640 = vmatprep.subr.bf16.mxu0 %v559
    %641 = vmatpush1.bf16.msra.mxu0 %v558
    %642 = vmatprep.subr.bf16.mxu0 %v551
    %643 = vmatpush1.bf16.msra.mxu0 %v550
    %644 = vmatprep.subr.bf16.mxu0 %v543
    %645 = vmatpush1.bf16.msra.mxu0 %v542
    %646 = vmatprep.subr.bf16.mxu0 %v535
    %647 = vmatpush1.bf16.msra.mxu0 %v534
    %648 = vmatprep.subr.bf16.mxu0 %v527
    %649 = vmatpush1.bf16.msra.mxu0 %v526
    %650 = vmatprep.subr.bf16.mxu0 %v519
    %651 = vmatpush1.bf16.msra.mxu0 %v518
    %652 = vmatprep.subr.bf16.mxu0 %v511
    %653 = vmatpush1.bf16.msra.mxu0 %v510
    %654 = vmatprep.subr.bf16.mxu0 0
    %655 = vmatpush2.bf16.msra.mxu0 0
    %656 = vmatprep.subr.bf16.mxu0 0
    %657 = vmatpush2.bf16.msra.mxu0 0
    %658 = vmatprep.subr.bf16.mxu0 0
    %659 = vmatpush2.bf16.msra.mxu0 0
    %660 = vmatprep.subr.bf16.mxu0 0
    %661 = vmatpush2.bf16.msra.mxu0 0
    %662 = vmatprep.subr.bf16.mxu0 0
    %663 = vmatpush2.bf16.msra.mxu0 0
    %664 = vmatprep.subr.bf16.mxu0 0
    %665 = vmatpush2.bf16.msra.mxu0 0
    %666 = vmatprep.subr.bf16.mxu0 0
    %667 = vmatpush2.bf16.msra.mxu0 0
    %668 = vmatprep.subr.bf16.mxu0 0
    %669 = vmatpush2.bf16.msra.mxu0 0
    %670 = vmatprep.mubr.bf16.mxu0 0
    %671 = vmatmul.mubr.bf16.gmra.mxu0 %v286
    %v672 = vpop.f32.mrf.mxu0
    %v673 = vadd.f32 %v185, %v672
    %v674 = vpop.f32.mrf.mxu0
    %v675 = vadd.f32 %v189, %v674
    %v676 = vpop.f32.mrf.mxu0
    %v677 = vadd.f32 %v185, %v676
    %v678 = vpop.f32.mrf.mxu0
    %v679 = vadd.f32 %v189, %v678
    %680 = vmatprep.mubr.bf16.mxu0 0
    %681 = vmatmul.mubr.bf16.gmra.mxu0 %v287
    %v682 = vpop.f32.mrf.mxu0
    %v683 = vadd.f32 %v185, %v682
    %v684 = vpop.f32.mrf.mxu0
    %v685 = vadd.f32 %v189, %v684
    %v686 = vpop.f32.mrf.mxu0
    %v687 = vadd.f32 %v185, %v686
    %v688 = vpop.f32.mrf.mxu0
    %v689 = vadd.f32 %v189, %v688
    %690 = vmatprep.mubr.bf16.mxu0 0
    %691 = vmatmul.mubr.bf16.gmra.mxu0 %v288
    %v692 = vpop.f32.mrf.mxu0
    %v693 = vadd.f32 %v185, %v692
    %v694 = vpop.f32.mrf.mxu0
    %v695 = vadd.f32 %v189, %v694
    %v696 = vpop.f32.mrf.mxu0
    %v697 = vadd.f32 %v185, %v696
    %v698 = vpop.f32.mrf.mxu0
    %v699 = vadd.f32 %v189, %v698
    %700 = vmatprep.mubr.bf16.mxu0 0
    %701 = vmatmul.mubr.bf16.gmra.mxu0 %v289
    %v702 = vpop.f32.mrf.mxu0
    %v703 = vadd.f32 %v185, %v702
    %v704 = vpop.f32.mrf.mxu0
    %v705 = vadd.f32 %v189, %v704
    %v706 = vpop.f32.mrf.mxu0
    %v707 = vadd.f32 %v185, %v706
    %v708 = vpop.f32.mrf.mxu0
    %v709 = vadd.f32 %v189, %v708
    %710 = vmatprep.mubr.bf16.mxu0 0
    %711 = vmatmul.mubr.bf16.gmra.mxu0 %v290
    %v712 = vpop.f32.mrf.mxu0
    %v713 = vadd.f32 %v185, %v712
    %v714 = vpop.f32.mrf.mxu0
    %v715 = vadd.f32 %v189, %v714
    %v716 = vpop.f32.mrf.mxu0
    %v717 = vadd.f32 %v185, %v716
    %v718 = vpop.f32.mrf.mxu0
    %v719 = vadd.f32 %v189, %v718
    %720 = vmatprep.mubr.bf16.mxu0 0
    %721 = vmatmul.mubr.bf16.gmra.mxu0 %v291
    %v722 = vpop.f32.mrf.mxu0
    %v723 = vadd.f32 %v185, %v722
    %v724 = vpop.f32.mrf.mxu0
    %v725 = vadd.f32 %v189, %v724
    %v726 = vpop.f32.mrf.mxu0
    %v727 = vadd.f32 %v185, %v726
    %v728 = vpop.f32.mrf.mxu0
    %v729 = vadd.f32 %v189, %v728
    %730 = vmatprep.mubr.bf16.mxu0 0
    %731 = vmatmul.mubr.bf16.gmra.mxu0 %v292
    %v732 = vpop.f32.mrf.mxu0
    %v733 = vadd.f32 %v185, %v732
    %v734 = vpop.f32.mrf.mxu0
    %v735 = vadd.f32 %v189, %v734
    %v736 = vpop.f32.mrf.mxu0
    %v737 = vadd.f32 %v185, %v736
    %v738 = vpop.f32.mrf.mxu0
    %v739 = vadd.f32 %v189, %v738
    %740 = vmatprep.mubr.bf16.mxu0 0
    %741 = vmatmul.mubr.bf16.gmra.mxu0 %v293
    %v742 = vpop.f32.mrf.mxu0
    %v743 = vadd.f32 %v185, %v742
    %v744 = vpop.f32.mrf.mxu0
    %v745 = vadd.f32 %v189, %v744
    %v746 = vpop.f32.mrf.mxu0
    %v747 = vadd.f32 %v185, %v746
    %v748 = vpop.f32.mrf.mxu0
    %v749 = vadd.f32 %v189, %v748
    %750 = vmatprep.mubr.bf16.mxu0 0
    %751 = vmatmul.mubr.bf16.gmra.mxu0 %v294
    %v752 = vpop.f32.mrf.mxu0
    %v753 = vadd.f32 %v185, %v752
    %v754 = vpop.f32.mrf.mxu0
    %v755 = vadd.f32 %v189, %v754
    %v756 = vpop.f32.mrf.mxu0
    %v757 = vadd.f32 %v185, %v756
    %v758 = vpop.f32.mrf.mxu0
    %v759 = vadd.f32 %v189, %v758
    %760 = vmatprep.mubr.bf16.mxu0 0
    %761 = vmatmul.mubr.bf16.gmra.mxu0 %v295
    %v762 = vpop.f32.mrf.mxu0
    %v763 = vadd.f32 %v185, %v762
    %v764 = vpop.f32.mrf.mxu0
    %v765 = vadd.f32 %v189, %v764
    %v766 = vpop.f32.mrf.mxu0
    %v767 = vadd.f32 %v185, %v766
    %v768 = vpop.f32.mrf.mxu0
    %v769 = vadd.f32 %v189, %v768
    %770 = vmatprep.mubr.bf16.mxu0 0
    %771 = vmatmul.mubr.bf16.gmra.mxu0 %v296
    %v772 = vpop.f32.mrf.mxu0
    %v773 = vadd.f32 %v185, %v772
    %v774 = vpop.f32.mrf.mxu0
    %v775 = vadd.f32 %v189, %v774
    %v776 = vpop.f32.mrf.mxu0
    %v777 = vadd.f32 %v185, %v776
    %v778 = vpop.f32.mrf.mxu0
    %v779 = vadd.f32 %v189, %v778
    %780 = vmatprep.mubr.bf16.mxu0 0
    %781 = vmatmul.mubr.bf16.gmra.mxu0 %v297
    %v782 = vpop.f32.mrf.mxu0
    %v783 = vadd.f32 %v185, %v782
    %v784 = vpop.f32.mrf.mxu0
    %v785 = vadd.f32 %v189, %v784
    %v786 = vpop.f32.mrf.mxu0
    %v787 = vadd.f32 %v185, %v786
    %v788 = vpop.f32.mrf.mxu0
    %v789 = vadd.f32 %v189, %v788
    %790 = vmatprep.mubr.bf16.mxu0 0
    %791 = vmatmul.mubr.bf16.gmra.mxu0 %v298
    %v792 = vpop.f32.mrf.mxu0
    %v793 = vadd.f32 %v185, %v792
    %v794 = vpop.f32.mrf.mxu0
    %v795 = vadd.f32 %v189, %v794
    %v796 = vpop.f32.mrf.mxu0
    %v797 = vadd.f32 %v185, %v796
    %v798 = vpop.f32.mrf.mxu0
    %v799 = vadd.f32 %v189, %v798
    %800 = vmatprep.mubr.bf16.mxu0 0
    %801 = vmatmul.mubr.bf16.gmra.mxu0 %v299
    %v802 = vpop.f32.mrf.mxu0
    %v803 = vadd.f32 %v185, %v802
    %v804 = vpop.f32.mrf.mxu0
    %v805 = vadd.f32 %v189, %v804
    %v806 = vpop.f32.mrf.mxu0
    %v807 = vadd.f32 %v185, %v806
    %v808 = vpop.f32.mrf.mxu0
    %v809 = vadd.f32 %v189, %v808
    %810 = vmatprep.mubr.bf16.mxu0 0
    %811 = vmatmul.mubr.bf16.gmra.mxu0 %v300
    %v812 = vpop.f32.mrf.mxu0
    %v813 = vadd.f32 %v185, %v812
    %v814 = vpop.f32.mrf.mxu0
    %v815 = vadd.f32 %v189, %v814
    %v816 = vpop.f32.mrf.mxu0
    %v817 = vadd.f32 %v185, %v816
    %v818 = vpop.f32.mrf.mxu0
    %v819 = vadd.f32 %v189, %v818
    %820 = vmatprep.mubr.bf16.mxu0 0
    %821 = vmatmul.mubr.bf16.gmra.mxu0 %v301
    %v822 = vpop.f32.mrf.mxu0
    %v823 = vadd.f32 %v185, %v822
    %v824 = vpop.f32.mrf.mxu0
    %v825 = vadd.f32 %v189, %v824
    %v826 = vpop.f32.mrf.mxu0
    %v827 = vadd.f32 %v185, %v826
    %v828 = vpop.f32.mrf.mxu0
    %v829 = vadd.f32 %v189, %v828
    %830 = vdwg.mxu0
    %831 = vmatprep.subr.bf16.mxu0 %v569
    %832 = vmatpush1.bf16.msra.mxu0 %v568
    %833 = vmatprep.subr.bf16.mxu0 %v561
    %834 = vmatpush1.bf16.msra.mxu0 %v560
    %835 = vmatprep.subr.bf16.mxu0 %v553
    %836 = vmatpush1.bf16.msra.mxu0 %v552
    %837 = vmatprep.subr.bf16.mxu0 %v545
    %838 = vmatpush1.bf16.msra.mxu0 %v544
    %839 = vmatprep.subr.bf16.mxu0 %v537
    %840 = vmatpush1.bf16.msra.mxu0 %v536
    %841 = vmatprep.subr.bf16.mxu0 %v529
    %842 = vmatpush1.bf16.msra.mxu0 %v528
    %843 = vmatprep.subr.bf16.mxu0 %v521
    %844 = vmatpush1.bf16.msra.mxu0 %v520
    %845 = vmatprep.subr.bf16.mxu0 %v513
    %846 = vmatpush1.bf16.msra.mxu0 %v512
    %847 = vmatprep.subr.bf16.mxu0 0
    %848 = vmatpush2.bf16.msra.mxu0 0
    %849 = vmatprep.subr.bf16.mxu0 0
    %850 = vmatpush2.bf16.msra.mxu0 0
    %851 = vmatprep.subr.bf16.mxu0 0
    %852 = vmatpush2.bf16.msra.mxu0 0
    %853 = vmatprep.subr.bf16.mxu0 0
    %854 = vmatpush2.bf16.msra.mxu0 0
    %855 = vmatprep.subr.bf16.mxu0 0
    %856 = vmatpush2.bf16.msra.mxu0 0
    %857 = vmatprep.subr.bf16.mxu0 0
    %858 = vmatpush2.bf16.msra.mxu0 0
    %859 = vmatprep.subr.bf16.mxu0 0
    %860 = vmatpush2.bf16.msra.mxu0 0
    %861 = vmatprep.subr.bf16.mxu0 0
    %862 = vmatpush2.bf16.msra.mxu0 0
    %863 = vmatprep.mubr.bf16.mxu0 0
    %864 = vmatmul.mubr.bf16.gmra.mxu0 %v286
    %v865 = vpop.f32.mrf.mxu0
    %v866 = vadd.f32 %v193, %v865
    %v867 = vpop.f32.mrf.mxu0
    %v868 = vadd.f32 %v197, %v867
    %v869 = vpop.f32.mrf.mxu0
    %v870 = vadd.f32 %v193, %v869
    %v871 = vpop.f32.mrf.mxu0
    %v872 = vadd.f32 %v197, %v871
    %873 = vmatprep.mubr.bf16.mxu0 0
    %874 = vmatmul.mubr.bf16.gmra.mxu0 %v287
    %v875 = vpop.f32.mrf.mxu0
    %v876 = vadd.f32 %v193, %v875
    %v877 = vpop.f32.mrf.mxu0
    %v878 = vadd.f32 %v197, %v877
    %v879 = vpop.f32.mrf.mxu0
    %v880 = vadd.f32 %v193, %v879
    %v881 = vpop.f32.mrf.mxu0
    %v882 = vadd.f32 %v197, %v881
    %883 = vmatprep.mubr.bf16.mxu0 0
    %884 = vmatmul.mubr.bf16.gmra.mxu0 %v288
    %v885 = vpop.f32.mrf.mxu0
    %v886 = vadd.f32 %v193, %v885
    %v887 = vpop.f32.mrf.mxu0
    %v888 = vadd.f32 %v197, %v887
    %v889 = vpop.f32.mrf.mxu0
    %v890 = vadd.f32 %v193, %v889
    %v891 = vpop.f32.mrf.mxu0
    %v892 = vadd.f32 %v197, %v891
    %893 = vmatprep.mubr.bf16.mxu0 0
    %894 = vmatmul.mubr.bf16.gmra.mxu0 %v289
    %v895 = vpop.f32.mrf.mxu0
    %v896 = vadd.f32 %v193, %v895
    %v897 = vpop.f32.mrf.mxu0
    %v898 = vadd.f32 %v197, %v897
    %v899 = vpop.f32.mrf.mxu0
    %v900 = vadd.f32 %v193, %v899
    %v901 = vpop.f32.mrf.mxu0
    %v902 = vadd.f32 %v197, %v901
    %903 = vmatprep.mubr.bf16.mxu0 0
    %904 = vmatmul.mubr.bf16.gmra.mxu0 %v290
    %v905 = vpop.f32.mrf.mxu0
    %v906 = vadd.f32 %v193, %v905
    %v907 = vpop.f32.mrf.mxu0
    %v908 = vadd.f32 %v197, %v907
    %v909 = vpop.f32.mrf.mxu0
    %v910 = vadd.f32 %v193, %v909
    %v911 = vpop.f32.mrf.mxu0
    %v912 = vadd.f32 %v197, %v911
    %913 = vmatprep.mubr.bf16.mxu0 0
    %914 = vmatmul.mubr.bf16.gmra.mxu0 %v291
    %v915 = vpop.f32.mrf.mxu0
    %v916 = vadd.f32 %v193, %v915
    %v917 = vpop.f32.mrf.mxu0
    %v918 = vadd.f32 %v197, %v917
    %v919 = vpop.f32.mrf.mxu0
    %v920 = vadd.f32 %v193, %v919
    %v921 = vpop.f32.mrf.mxu0
    %v922 = vadd.f32 %v197, %v921
    %923 = vmatprep.mubr.bf16.mxu0 0
    %924 = vmatmul.mubr.bf16.gmra.mxu0 %v292
    %v925 = vpop.f32.mrf.mxu0
    %v926 = vadd.f32 %v193, %v925
    %v927 = vpop.f32.mrf.mxu0
    %v928 = vadd.f32 %v197, %v927
    %v929 = vpop.f32.mrf.mxu0
    %v930 = vadd.f32 %v193, %v929
    %v931 = vpop.f32.mrf.mxu0
    %v932 = vadd.f32 %v197, %v931
    %933 = vmatprep.mubr.bf16.mxu0 0
    %934 = vmatmul.mubr.bf16.gmra.mxu0 %v293
    %v935 = vpop.f32.mrf.mxu0
    %v936 = vadd.f32 %v193, %v935
    %v937 = vpop.f32.mrf.mxu0
    %v938 = vadd.f32 %v197, %v937
    %v939 = vpop.f32.mrf.mxu0
    %v940 = vadd.f32 %v193, %v939
    %v941 = vpop.f32.mrf.mxu0
    %v942 = vadd.f32 %v197, %v941
    %943 = vmatprep.mubr.bf16.mxu0 0
    %944 = vmatmul.mubr.bf16.gmra.mxu0 %v294
    %v945 = vpop.f32.mrf.mxu0
    %v946 = vadd.f32 %v193, %v945
    %v947 = vpop.f32.mrf.mxu0
    %v948 = vadd.f32 %v197, %v947
    %v949 = vpop.f32.mrf.mxu0
    %v950 = vadd.f32 %v193, %v949
    %v951 = vpop.f32.mrf.mxu0
    %v952 = vadd.f32 %v197, %v951
    %953 = vmatprep.mubr.bf16.mxu0 0
    %954 = vmatmul.mubr.bf16.gmra.mxu0 %v295
    %v955 = vpop.f32.mrf.mxu0
    %v956 = vadd.f32 %v193, %v955
    %v957 = vpop.f32.mrf.mxu0
    %v958 = vadd.f32 %v197, %v957
    %v959 = vpop.f32.mrf.mxu0
    %v960 = vadd.f32 %v193, %v959
    %v961 = vpop.f32.mrf.mxu0
    %v962 = vadd.f32 %v197, %v961
    %963 = vmatprep.mubr.bf16.mxu0 0
    %964 = vmatmul.mubr.bf16.gmra.mxu0 %v296
    %v965 = vpop.f32.mrf.mxu0
    %v966 = vadd.f32 %v193, %v965
    %v967 = vpop.f32.mrf.mxu0
    %v968 = vadd.f32 %v197, %v967
    %v969 = vpop.f32.mrf.mxu0
    %v970 = vadd.f32 %v193, %v969
    %v971 = vpop.f32.mrf.mxu0
    %v972 = vadd.f32 %v197, %v971
    %973 = vmatprep.mubr.bf16.mxu0 0
    %974 = vmatmul.mubr.bf16.gmra.mxu0 %v297
    %v975 = vpop.f32.mrf.mxu0
    %v976 = vadd.f32 %v193, %v975
    %v977 = vpop.f32.mrf.mxu0
    %v978 = vadd.f32 %v197, %v977
    %v979 = vpop.f32.mrf.mxu0
    %v980 = vadd.f32 %v193, %v979
    %v981 = vpop.f32.mrf.mxu0
    %v982 = vadd.f32 %v197, %v981
    %983 = vmatprep.mubr.bf16.mxu0 0
    %984 = vmatmul.mubr.bf16.gmra.mxu0 %v298
    %v985 = vpop.f32.mrf.mxu0
    %v986 = vadd.f32 %v193, %v985
    %v987 = vpop.f32.mrf.mxu0
    %v988 = vadd.f32 %v197, %v987
    %v989 = vpop.f32.mrf.mxu0
    %v990 = vadd.f32 %v193, %v989
    %v991 = vpop.f32.mrf.mxu0
    %v992 = vadd.f32 %v197, %v991
    %993 = vmatprep.mubr.bf16.mxu0 0
    %994 = vmatmul.mubr.bf16.gmra.mxu0 %v299
    %v995 = vpop.f32.mrf.mxu0
    %v996 = vadd.f32 %v193, %v995
    %v997 = vpop.f32.mrf.mxu0
    %v998 = vadd.f32 %v197, %v997
    %v999 = vpop.f32.mrf.mxu0
    %v1000 = vadd.f32 %v193, %v999
    %v1001 = vpop.f32.mrf.mxu0
    %v1002 = vadd.f32 %v197, %v1001
    %1003 = vmatprep.mubr.bf16.mxu0 0
    %1004 = vmatmul.mubr.bf16.gmra.mxu0 %v300
    %v1005 = vpop.f32.mrf.mxu0
    %v1006 = vadd.f32 %v193, %v1005
    %v1007 = vpop.f32.mrf.mxu0
    %v1008 = vadd.f32 %v197, %v1007
    %v1009 = vpop.f32.mrf.mxu0
    %v1010 = vadd.f32 %v193, %v1009
    %v1011 = vpop.f32.mrf.mxu0
    %v1012 = vadd.f32 %v197, %v1011
    %1013 = vmatprep.mubr.bf16.mxu0 0
    %1014 = vmatmul.mubr.bf16.gmra.mxu0 %v301
    %v1015 = vpop.f32.mrf.mxu0
    %v1016 = vadd.f32 %v193, %v1015
    %v1017 = vpop.f32.mrf.mxu0
    %v1018 = vadd.f32 %v197, %v1017
    %v1019 = vpop.f32.mrf.mxu0
    %v1020 = vadd.f32 %v193, %v1019
    %v1021 = vpop.f32.mrf.mxu0
    %v1022 = vadd.f32 %v197, %v1021
    %1023 = vdwg.mxu0
    %1024 = vmatprep.subr.bf16.mxu0 %v571
    %1025 = vmatpush1.bf16.msra.mxu0 %v570
    %1026 = vmatprep.subr.bf16.mxu0 %v563
    %1027 = vmatpush1.bf16.msra.mxu0 %v562
    %1028 = vmatprep.subr.bf16.mxu0 %v555
    %1029 = vmatpush1.bf16.msra.mxu0 %v554
    %1030 = vmatprep.subr.bf16.mxu0 %v547
    %1031 = vmatpush1.bf16.msra.mxu0 %v546
    %1032 = vmatprep.subr.bf16.mxu0 %v539
    %1033 = vmatpush1.bf16.msra.mxu0 %v538
    %1034 = vmatprep.subr.bf16.mxu0 %v531
    %1035 = vmatpush1.bf16.msra.mxu0 %v530
    %1036 = vmatprep.subr.bf16.mxu0 %v523
    %1037 = vmatpush1.bf16.msra.mxu0 %v522
    %1038 = vmatprep.subr.bf16.mxu0 %v515
    %1039 = vmatpush1.bf16.msra.mxu0 %v514
    %1040 = vmatprep.subr.bf16.mxu0 0
    %1041 = vmatpush2.bf16.msra.mxu0 0
    %1042 = vmatprep.subr.bf16.mxu0 0
    %1043 = vmatpush2.bf16.msra.mxu0 0
    %1044 = vmatprep.subr.bf16.mxu0 0
    %1045 = vmatpush2.bf16.msra.mxu0 0
    %1046 = vmatprep.subr.bf16.mxu0 0
    %1047 = vmatpush2.bf16.msra.mxu0 0
    %1048 = vmatprep.subr.bf16.mxu0 0
    %1049 = vmatpush2.bf16.msra.mxu0 0
    %1050 = vmatprep.subr.bf16.mxu0 0
    %1051 = vmatpush2.bf16.msra.mxu0 0
    %1052 = vmatprep.subr.bf16.mxu0 0
    %1053 = vmatpush2.bf16.msra.mxu0 0
    %1054 = vmatprep.subr.bf16.mxu0 0
    %1055 = vmatpush2.bf16.msra.mxu0 0
    %1056 = vmatprep.mubr.bf16.mxu0 0
    %1057 = vmatmul.mubr.bf16.gmra.mxu0 %v286
    %v1058 = vpop.f32.mrf.mxu0
    %v1059 = vadd.f32 %v201, %v1058
    %v1060 = vpop.f32.mrf.mxu0
    %v1061 = vadd.f32 %v205, %v1060
    %v1062 = vpop.f32.mrf.mxu0
    %v1063 = vadd.f32 %v201, %v1062
    %v1064 = vpop.f32.mrf.mxu0
    %v1065 = vadd.f32 %v205, %v1064
    %1066 = vmatprep.mubr.bf16.mxu0 0
    %1067 = vmatmul.mubr.bf16.gmra.mxu0 %v287
    %v1068 = vpop.f32.mrf.mxu0
    %v1069 = vadd.f32 %v201, %v1068
    %v1070 = vpop.f32.mrf.mxu0
    %v1071 = vadd.f32 %v205, %v1070
    %v1072 = vpop.f32.mrf.mxu0
    %v1073 = vadd.f32 %v201, %v1072
    %v1074 = vpop.f32.mrf.mxu0
    %v1075 = vadd.f32 %v205, %v1074
    %1076 = vmatprep.mubr.bf16.mxu0 0
    %1077 = vmatmul.mubr.bf16.gmra.mxu0 %v288
    %v1078 = vpop.f32.mrf.mxu0
    %v1079 = vadd.f32 %v201, %v1078
    %v1080 = vpop.f32.mrf.mxu0
    %v1081 = vadd.f32 %v205, %v1080
    %v1082 = vpop.f32.mrf.mxu0
    %v1083 = vadd.f32 %v201, %v1082
    %v1084 = vpop.f32.mrf.mxu0
    %v1085 = vadd.f32 %v205, %v1084
    %1086 = vmatprep.mubr.bf16.mxu0 0
    %1087 = vmatmul.mubr.bf16.gmra.mxu0 %v289
    %v1088 = vpop.f32.mrf.mxu0
    %v1089 = vadd.f32 %v201, %v1088
    %v1090 = vpop.f32.mrf.mxu0
    %v1091 = vadd.f32 %v205, %v1090
    %v1092 = vpop.f32.mrf.mxu0
    %v1093 = vadd.f32 %v201, %v1092
    %v1094 = vpop.f32.mrf.mxu0
    %v1095 = vadd.f32 %v205, %v1094
    %1096 = vmatprep.mubr.bf16.mxu0 0
    %1097 = vmatmul.mubr.bf16.gmra.mxu0 %v290
    %v1098 = vpop.f32.mrf.mxu0
    %v1099 = vadd.f32 %v201, %v1098
    %v1100 = vpop.f32.mrf.mxu0
    %v1101 = vadd.f32 %v205, %v1100
    %v1102 = vpop.f32.mrf.mxu0
    %v1103 = vadd.f32 %v201, %v1102
    %v1104 = vpop.f32.mrf.mxu0
    %v1105 = vadd.f32 %v205, %v1104
    %1106 = vmatprep.mubr.bf16.mxu0 0
    %1107 = vmatmul.mubr.bf16.gmra.mxu0 %v291
    %v1108 = vpop.f32.mrf.mxu0
    %v1109 = vadd.f32 %v201, %v1108
    %v1110 = vpop.f32.mrf.mxu0
    %v1111 = vadd.f32 %v205, %v1110
    %v1112 = vpop.f32.mrf.mxu0
    %v1113 = vadd.f32 %v201, %v1112
    %v1114 = vpop.f32.mrf.mxu0
    %v1115 = vadd.f32 %v205, %v1114
    %1116 = vmatprep.mubr.bf16.mxu0 0
    %1117 = vmatmul.mubr.bf16.gmra.mxu0 %v292
    %v1118 = vpop.f32.mrf.mxu0
    %v1119 = vadd.f32 %v201, %v1118
    %v1120 = vpop.f32.mrf.mxu0
    %v1121 = vadd.f32 %v205, %v1120
    %v1122 = vpop.f32.mrf.mxu0
    %v1123 = vadd.f32 %v201, %v1122
    %v1124 = vpop.f32.mrf.mxu0
    %v1125 = vadd.f32 %v205, %v1124
    %1126 = vmatprep.mubr.bf16.mxu0 0
    %1127 = vmatmul.mubr.bf16.gmra.mxu0 %v293
    %v1128 = vpop.f32.mrf.mxu0
    %v1129 = vadd.f32 %v201, %v1128
    %v1130 = vpop.f32.mrf.mxu0
    %v1131 = vadd.f32 %v205, %v1130
    %v1132 = vpop.f32.mrf.mxu0
    %v1133 = vadd.f32 %v201, %v1132
    %v1134 = vpop.f32.mrf.mxu0
    %v1135 = vadd.f32 %v205, %v1134
    %1136 = vmatprep.mubr.bf16.mxu0 0
    %1137 = vmatmul.mubr.bf16.gmra.mxu0 %v294
    %v1138 = vpop.f32.mrf.mxu0
    %v1139 = vadd.f32 %v201, %v1138
    %v1140 = vpop.f32.mrf.mxu0
    %v1141 = vadd.f32 %v205, %v1140
    %v1142 = vpop.f32.mrf.mxu0
    %v1143 = vadd.f32 %v201, %v1142
    %v1144 = vpop.f32.mrf.mxu0
    %v1145 = vadd.f32 %v205, %v1144
    %1146 = vmatprep.mubr.bf16.mxu0 0
    %1147 = vmatmul.mubr.bf16.gmra.mxu0 %v295
    %v1148 = vpop.f32.mrf.mxu0
    %v1149 = vadd.f32 %v201, %v1148
    %v1150 = vpop.f32.mrf.mxu0
    %v1151 = vadd.f32 %v205, %v1150
    %v1152 = vpop.f32.mrf.mxu0
    %v1153 = vadd.f32 %v201, %v1152
    %v1154 = vpop.f32.mrf.mxu0
    %v1155 = vadd.f32 %v205, %v1154
    %1156 = vmatprep.mubr.bf16.mxu0 0
    %1157 = vmatmul.mubr.bf16.gmra.mxu0 %v296
    %v1158 = vpop.f32.mrf.mxu0
    %v1159 = vadd.f32 %v201, %v1158
    %v1160 = vpop.f32.mrf.mxu0
    %v1161 = vadd.f32 %v205, %v1160
    %v1162 = vpop.f32.mrf.mxu0
    %v1163 = vadd.f32 %v201, %v1162
    %v1164 = vpop.f32.mrf.mxu0
    %v1165 = vadd.f32 %v205, %v1164
    %1166 = vmatprep.mubr.bf16.mxu0 0
    %1167 = vmatmul.mubr.bf16.gmra.mxu0 %v297
    %v1168 = vpop.f32.mrf.mxu0
    %v1169 = vadd.f32 %v201, %v1168
    %v1170 = vpop.f32.mrf.mxu0
    %v1171 = vadd.f32 %v205, %v1170
    %v1172 = vpop.f32.mrf.mxu0
    %v1173 = vadd.f32 %v201, %v1172
    %v1174 = vpop.f32.mrf.mxu0
    %v1175 = vadd.f32 %v205, %v1174
    %1176 = vmatprep.mubr.bf16.mxu0 0
    %1177 = vmatmul.mubr.bf16.gmra.mxu0 %v298
    %v1178 = vpop.f32.mrf.mxu0
    %v1179 = vadd.f32 %v201, %v1178
    %v1180 = vpop.f32.mrf.mxu0
    %v1181 = vadd.f32 %v205, %v1180
    %v1182 = vpop.f32.mrf.mxu0
    %v1183 = vadd.f32 %v201, %v1182
    %v1184 = vpop.f32.mrf.mxu0
    %v1185 = vadd.f32 %v205, %v1184
    %1186 = vmatprep.mubr.bf16.mxu0 0
    %1187 = vmatmul.mubr.bf16.gmra.mxu0 %v299
    %v1188 = vpop.f32.mrf.mxu0
    %v1189 = vadd.f32 %v201, %v1188
    %v1190 = vpop.f32.mrf.mxu0
    %v1191 = vadd.f32 %v205, %v1190
    %v1192 = vpop.f32.mrf.mxu0
    %v1193 = vadd.f32 %v201, %v1192
    %v1194 = vpop.f32.mrf.mxu0
    %v1195 = vadd.f32 %v205, %v1194
    %1196 = vmatprep.mubr.bf16.mxu0 0
    %1197 = vmatmul.mubr.bf16.gmra.mxu0 %v300
    %v1198 = vpop.f32.mrf.mxu0
    %v1199 = vadd.f32 %v201, %v1198
    %v1200 = vpop.f32.mrf.mxu0
    %v1201 = vadd.f32 %v205, %v1200
    %v1202 = vpop.f32.mrf.mxu0
    %v1203 = vadd.f32 %v201, %v1202
    %v1204 = vpop.f32.mrf.mxu0
    %v1205 = vadd.f32 %v205, %v1204
    %1206 = vmatprep.mubr.bf16.mxu0 0
    %1207 = vmatmul.mubr.bf16.gmra.mxu0 %v301
    %v1208 = vpop.f32.mrf.mxu0
    %v1209 = vadd.f32 %v201, %v1208
    %v1210 = vpop.f32.mrf.mxu0
    %v1211 = vadd.f32 %v205, %v1210
    %v1212 = vpop.f32.mrf.mxu0
    %v1213 = vadd.f32 %v201, %v1212
    %v1214 = vpop.f32.mrf.mxu0
    %v1215 = vadd.f32 %v205, %v1214
    %1216 = vdwg.mxu0
    %1217 = vmatprep.subr.bf16.mxu0 %v573
    %1218 = vmatpush1.bf16.msra.mxu0 %v572
    %1219 = vmatprep.subr.bf16.mxu0 %v565
    %1220 = vmatpush1.bf16.msra.mxu0 %v564
    %1221 = vmatprep.subr.bf16.mxu0 %v557
    %1222 = vmatpush1.bf16.msra.mxu0 %v556
    %1223 = vmatprep.subr.bf16.mxu0 %v549
    %1224 = vmatpush1.bf16.msra.mxu0 %v548
    %1225 = vmatprep.subr.bf16.mxu0 %v541
    %1226 = vmatpush1.bf16.msra.mxu0 %v540
    %1227 = vmatprep.subr.bf16.mxu0 %v533
    %1228 = vmatpush1.bf16.msra.mxu0 %v532
    %1229 = vmatprep.subr.bf16.mxu0 %v525
    %1230 = vmatpush1.bf16.msra.mxu0 %v524
    %1231 = vmatprep.subr.bf16.mxu0 %v517
    %1232 = vmatpush1.bf16.msra.mxu0 %v516
    %1233 = vmatprep.subr.bf16.mxu0 0
    %1234 = vmatpush2.bf16.msra.mxu0 0
    %1235 = vmatprep.subr.bf16.mxu0 0
    %1236 = vmatpush2.bf16.msra.mxu0 0
    %1237 = vmatprep.subr.bf16.mxu0 0
    %1238 = vmatpush2.bf16.msra.mxu0 0
    %1239 = vmatprep.subr.bf16.mxu0 0
    %1240 = vmatpush2.bf16.msra.mxu0 0
    %1241 = vmatprep.subr.bf16.mxu0 0
    %1242 = vmatpush2.bf16.msra.mxu0 0
    %1243 = vmatprep.subr.bf16.mxu0 0
    %1244 = vmatpush2.bf16.msra.mxu0 0
    %1245 = vmatprep.subr.bf16.mxu0 0
    %1246 = vmatpush2.bf16.msra.mxu0 0
    %1247 = vmatprep.subr.bf16.mxu0 0
    %1248 = vmatpush2.bf16.msra.mxu0 0
    %1249 = vmatprep.mubr.bf16.mxu0 0
    %1250 = vmatmul.mubr.bf16.gmra.mxu0 %v286
    %v1251 = vpop.f32.mrf.mxu0
    %v1252 = vadd.f32 %v209, %v1251
    %v1253 = vpop.f32.mrf.mxu0
    %v1254 = vadd.f32 %v213, %v1253
    %v1255 = vpop.f32.mrf.mxu0
    %v1256 = vadd.f32 %v209, %v1255
    %v1257 = vpop.f32.mrf.mxu0
    %v1258 = vadd.f32 %v213, %v1257
    %1259 = vmatprep.mubr.bf16.mxu0 0
    %1260 = vmatmul.mubr.bf16.gmra.mxu0 %v287
    %v1261 = vpop.f32.mrf.mxu0
    %v1262 = vadd.f32 %v209, %v1261
    %v1263 = vpop.f32.mrf.mxu0
    %v1264 = vadd.f32 %v213, %v1263
    %v1265 = vpop.f32.mrf.mxu0
    %v1266 = vadd.f32 %v209, %v1265
    %v1267 = vpop.f32.mrf.mxu0
    %v1268 = vadd.f32 %v213, %v1267
    %1269 = vmatprep.mubr.bf16.mxu0 0
    %1270 = vmatmul.mubr.bf16.gmra.mxu0 %v288
    %v1271 = vpop.f32.mrf.mxu0
    %v1272 = vadd.f32 %v209, %v1271
    %v1273 = vpop.f32.mrf.mxu0
    %v1274 = vadd.f32 %v213, %v1273
    %v1275 = vpop.f32.mrf.mxu0
    %v1276 = vadd.f32 %v209, %v1275
    %v1277 = vpop.f32.mrf.mxu0
    %v1278 = vadd.f32 %v213, %v1277
    %1279 = vmatprep.mubr.bf16.mxu0 0
    %1280 = vmatmul.mubr.bf16.gmra.mxu0 %v289
    %v1281 = vpop.f32.mrf.mxu0
    %v1282 = vadd.f32 %v209, %v1281
    %v1283 = vpop.f32.mrf.mxu0
    %v1284 = vadd.f32 %v213, %v1283
    %v1285 = vpop.f32.mrf.mxu0
    %v1286 = vadd.f32 %v209, %v1285
    %v1287 = vpop.f32.mrf.mxu0
    %v1288 = vadd.f32 %v213, %v1287
    %1289 = vmatprep.mubr.bf16.mxu0 0
    %1290 = vmatmul.mubr.bf16.gmra.mxu0 %v290
    %v1291 = vpop.f32.mrf.mxu0
    %v1292 = vadd.f32 %v209, %v1291
    %v1293 = vpop.f32.mrf.mxu0
    %v1294 = vadd.f32 %v213, %v1293
    %v1295 = vpop.f32.mrf.mxu0
    %v1296 = vadd.f32 %v209, %v1295
    %v1297 = vpop.f32.mrf.mxu0
    %v1298 = vadd.f32 %v213, %v1297
    %1299 = vmatprep.mubr.bf16.mxu0 0
    %1300 = vmatmul.mubr.bf16.gmra.mxu0 %v291
    %v1301 = vpop.f32.mrf.mxu0
    %v1302 = vadd.f32 %v209, %v1301
    %v1303 = vpop.f32.mrf.mxu0
    %v1304 = vadd.f32 %v213, %v1303
    %v1305 = vpop.f32.mrf.mxu0
    %v1306 = vadd.f32 %v209, %v1305
    %v1307 = vpop.f32.mrf.mxu0
    %v1308 = vadd.f32 %v213, %v1307
    %1309 = vmatprep.mubr.bf16.mxu0 0
    %1310 = vmatmul.mubr.bf16.gmra.mxu0 %v292
    %v1311 = vpop.f32.mrf.mxu0
    %v1312 = vadd.f32 %v209, %v1311
    %v1313 = vpop.f32.mrf.mxu0
    %v1314 = vadd.f32 %v213, %v1313
    %v1315 = vpop.f32.mrf.mxu0
    %v1316 = vadd.f32 %v209, %v1315
    %v1317 = vpop.f32.mrf.mxu0
    %v1318 = vadd.f32 %v213, %v1317
    %1319 = vmatprep.mubr.bf16.mxu0 0
    %1320 = vmatmul.mubr.bf16.gmra.mxu0 %v293
    %v1321 = vpop.f32.mrf.mxu0
    %v1322 = vadd.f32 %v209, %v1321
    %v1323 = vpop.f32.mrf.mxu0
    %v1324 = vadd.f32 %v213, %v1323
    %v1325 = vpop.f32.mrf.mxu0
    %v1326 = vadd.f32 %v209, %v1325
    %v1327 = vpop.f32.mrf.mxu0
    %v1328 = vadd.f32 %v213, %v1327
    %1329 = vmatprep.mubr.bf16.mxu0 0
    %1330 = vmatmul.mubr.bf16.gmra.mxu0 %v294
    %v1331 = vpop.f32.mrf.mxu0
    %v1332 = vadd.f32 %v209, %v1331
    %v1333 = vpop.f32.mrf.mxu0
    %v1334 = vadd.f32 %v213, %v1333
    %v1335 = vpop.f32.mrf.mxu0
    %v1336 = vadd.f32 %v209, %v1335
    %v1337 = vpop.f32.mrf.mxu0
    %v1338 = vadd.f32 %v213, %v1337
    %1339 = vmatprep.mubr.bf16.mxu0 0
    %1340 = vmatmul.mubr.bf16.gmra.mxu0 %v295
    %v1341 = vpop.f32.mrf.mxu0
    %v1342 = vadd.f32 %v209, %v1341
    %v1343 = vpop.f32.mrf.mxu0
    %v1344 = vadd.f32 %v213, %v1343
    %v1345 = vpop.f32.mrf.mxu0
    %v1346 = vadd.f32 %v209, %v1345
    %v1347 = vpop.f32.mrf.mxu0
    %v1348 = vadd.f32 %v213, %v1347
    %1349 = vmatprep.mubr.bf16.mxu0 0
    %1350 = vmatmul.mubr.bf16.gmra.mxu0 %v296
    %v1351 = vpop.f32.mrf.mxu0
    %v1352 = vadd.f32 %v209, %v1351
    %v1353 = vpop.f32.mrf.mxu0
    %v1354 = vadd.f32 %v213, %v1353
    %v1355 = vpop.f32.mrf.mxu0
    %v1356 = vadd.f32 %v209, %v1355
    %v1357 = vpop.f32.mrf.mxu0
    %v1358 = vadd.f32 %v213, %v1357
    %1359 = vmatprep.mubr.bf16.mxu0 0
    %1360 = vmatmul.mubr.bf16.gmra.mxu0 %v297
    %v1361 = vpop.f32.mrf.mxu0
    %v1362 = vadd.f32 %v209, %v1361
    %v1363 = vpop.f32.mrf.mxu0
    %v1364 = vadd.f32 %v213, %v1363
    %v1365 = vpop.f32.mrf.mxu0
    %v1366 = vadd.f32 %v209, %v1365
    %v1367 = vpop.f32.mrf.mxu0
    %v1368 = vadd.f32 %v213, %v1367
    %1369 = vmatprep.mubr.bf16.mxu0 0
    %1370 = vmatmul.mubr.bf16.gmra.mxu0 %v298
    %v1371 = vpop.f32.mrf.mxu0
    %v1372 = vadd.f32 %v209, %v1371
    %v1373 = vpop.f32.mrf.mxu0
    %v1374 = vadd.f32 %v213, %v1373
    %v1375 = vpop.f32.mrf.mxu0
    %v1376 = vadd.f32 %v209, %v1375
    %v1377 = vpop.f32.mrf.mxu0
    %v1378 = vadd.f32 %v213, %v1377
    %1379 = vmatprep.mubr.bf16.mxu0 0
    %1380 = vmatmul.mubr.bf16.gmra.mxu0 %v299
    %v1381 = vpop.f32.mrf.mxu0
    %v1382 = vadd.f32 %v209, %v1381
    %v1383 = vpop.f32.mrf.mxu0
    %v1384 = vadd.f32 %v213, %v1383
    %v1385 = vpop.f32.mrf.mxu0
    %v1386 = vadd.f32 %v209, %v1385
    %v1387 = vpop.f32.mrf.mxu0
    %v1388 = vadd.f32 %v213, %v1387
    %1389 = vmatprep.mubr.bf16.mxu0 0
    %1390 = vmatmul.mubr.bf16.gmra.mxu0 %v300
    %v1391 = vpop.f32.mrf.mxu0
    %v1392 = vadd.f32 %v209, %v1391
    %v1393 = vpop.f32.mrf.mxu0
    %v1394 = vadd.f32 %v213, %v1393
    %v1395 = vpop.f32.mrf.mxu0
    %v1396 = vadd.f32 %v209, %v1395
    %v1397 = vpop.f32.mrf.mxu0
    %v1398 = vadd.f32 %v213, %v1397
    %1399 = vmatprep.mubr.bf16.mxu0 0
    %1400 = vmatmul.mubr.bf16.gmra.mxu0 %v301
    %v1401 = vpop.f32.mrf.mxu0
    %v1402 = vadd.f32 %v209, %v1401
    %v1403 = vpop.f32.mrf.mxu0
    %v1404 = vadd.f32 %v213, %v1403
    %v1405 = vpop.f32.mrf.mxu0
    %v1406 = vadd.f32 %v209, %v1405
    %v1407 = vpop.f32.mrf.mxu0
    %v1408 = vadd.f32 %v213, %v1407
    %1409 = vdwg.mxu0
    %v1410 = vmax.f32 %v673, 0.0
    %v1411 = vmax.f32 %v675, 0.0
    %v1412 = vmax.f32 %v866, 0.0
    %v1413 = vmax.f32 %v868, 0.0
    %v1414 = vmax.f32 %v1059, 0.0
    %v1415 = vmax.f32 %v1061, 0.0
    %v1416 = vmax.f32 %v1252, 0.0
    %v1417 = vmax.f32 %v1254, 0.0
    %v1418 = vmax.f32 %v677, 0.0
    %v1419 = vmax.f32 %v679, 0.0
    %v1420 = vmax.f32 %v870, 0.0
    %v1421 = vmax.f32 %v872, 0.0
    %v1422 = vmax.f32 %v1063, 0.0
    %v1423 = vmax.f32 %v1065, 0.0
    %v1424 = vmax.f32 %v1256, 0.0
    %v1425 = vmax.f32 %v1258, 0.0
    %v1426 = vmax.f32 %v683, 0.0
    %v1427 = vmax.f32 %v685, 0.0
    %v1428 = vmax.f32 %v876, 0.0
    %v1429 = vmax.f32 %v878, 0.0
    %v1430 = vmax.f32 %v1069, 0.0
    %v1431 = vmax.f32 %v1071, 0.0
    %v1432 = vmax.f32 %v1262, 0.0
    %v1433 = vmax.f32 %v1264, 0.0
    %v1434 = vmax.f32 %v687, 0.0
    %v1435 = vmax.f32 %v689, 0.0
    %v1436 = vmax.f32 %v880, 0.0
    %v1437 = vmax.f32 %v882, 0.0
    %v1438 = vmax.f32 %v1073, 0.0
    %v1439 = vmax.f32 %v1075, 0.0
    %v1440 = vmax.f32 %v1266, 0.0
    %v1441 = vmax.f32 %v1268, 0.0
    %v1442 = vmax.f32 %v693, 0.0
    %v1443 = vmax.f32 %v695, 0.0
    %v1444 = vmax.f32 %v886, 0.0
    %v1445 = vmax.f32 %v888, 0.0
    %v1446 = vmax.f32 %v1079, 0.0
    %v1447 = vmax.f32 %v1081, 0.0
    %v1448 = vmax.f32 %v1272, 0.0
    %v1449 = vmax.f32 %v1274, 0.0
    %v1450 = vmax.f32 %v697, 0.0
    %v1451 = vmax.f32 %v699, 0.0
    %v1452 = vmax.f32 %v890, 0.0
    %v1453 = vmax.f32 %v892, 0.0
    %v1454 = vmax.f32 %v1083, 0.0
    %v1455 = vmax.f32 %v1085, 0.0
    %v1456 = vmax.f32 %v1276, 0.0
    %v1457 = vmax.f32 %v1278, 0.0
    %v1458 = vmax.f32 %v703, 0.0
    %v1459 = vmax.f32 %v705, 0.0
    %v1460 = vmax.f32 %v896, 0.0
    %v1461 = vmax.f32 %v898, 0.0
    %v1462 = vmax.f32 %v1089, 0.0
    %v1463 = vmax.f32 %v1091, 0.0
    %v1464 = vmax.f32 %v1282, 0.0
    %v1465 = vmax.f32 %v1284, 0.0
    %v1466 = vmax.f32 %v707, 0.0
    %v1467 = vmax.f32 %v709, 0.0
    %v1468 = vmax.f32 %v900, 0.0
    %v1469 = vmax.f32 %v902, 0.0
    %v1470 = vmax.f32 %v1093, 0.0
    %v1471 = vmax.f32 %v1095, 0.0
    %v1472 = vmax.f32 %v1286, 0.0
    %v1473 = vmax.f32 %v1288, 0.0
    %v1474 = vmax.f32 %v713, 0.0
    %v1475 = vmax.f32 %v715, 0.0
    %v1476 = vmax.f32 %v906, 0.0
    %v1477 = vmax.f32 %v908, 0.0
    %v1478 = vmax.f32 %v1099, 0.0
    %v1479 = vmax.f32 %v1101, 0.0
    %v1480 = vmax.f32 %v1292, 0.0
    %v1481 = vmax.f32 %v1294, 0.0
    %v1482 = vmax.f32 %v717, 0.0
    %v1483 = vmax.f32 %v719, 0.0
    %v1484 = vmax.f32 %v910, 0.0
    %v1485 = vmax.f32 %v912, 0.0
    %v1486 = vmax.f32 %v1103, 0.0
    %v1487 = vmax.f32 %v1105, 0.0
    %v1488 = vmax.f32 %v1296, 0.0
    %v1489 = vmax.f32 %v1298, 0.0
    %v1490 = vmax.f32 %v723, 0.0
    %v1491 = vmax.f32 %v725, 0.0
    %v1492 = vmax.f32 %v916, 0.0
    %v1493 = vmax.f32 %v918, 0.0
    %v1494 = vmax.f32 %v1109, 0.0
    %v1495 = vmax.f32 %v1111, 0.0
    %v1496 = vmax.f32 %v1302, 0.0
    %v1497 = vmax.f32 %v1304, 0.0
    %v1498 = vmax.f32 %v727, 0.0
    %v1499 = vmax.f32 %v729, 0.0
    %v1500 = vmax.f32 %v920, 0.0
    %v1501 = vmax.f32 %v922, 0.0
    %v1502 = vmax.f32 %v1113, 0.0
    %v1503 = vmax.f32 %v1115, 0.0
    %v1504 = vmax.f32 %v1306, 0.0
    %v1505 = vmax.f32 %v1308, 0.0
    %v1506 = vmax.f32 %v733, 0.0
    %v1507 = vmax.f32 %v735, 0.0
    %v1508 = vmax.f32 %v926, 0.0
    %v1509 = vmax.f32 %v928, 0.0
    %v1510 = vmax.f32 %v1119, 0.0
    %v1511 = vmax.f32 %v1121, 0.0
    %v1512 = vmax.f32 %v1312, 0.0
    %v1513 = vmax.f32 %v1314, 0.0
    %v1514 = vmax.f32 %v737, 0.0
    %v1515 = vmax.f32 %v739, 0.0
    %v1516 = vmax.f32 %v930, 0.0
    %v1517 = vmax.f32 %v932, 0.0
    %v1518 = vmax.f32 %v1123, 0.0
    %v1519 = vmax.f32 %v1125, 0.0
    %v1520 = vmax.f32 %v1316, 0.0
    %v1521 = vmax.f32 %v1318, 0.0
    %v1522 = vmax.f32 %v743, 0.0
    %v1523 = vmax.f32 %v745, 0.0
    %v1524 = vmax.f32 %v936, 0.0
    %v1525 = vmax.f32 %v938, 0.0
    %v1526 = vmax.f32 %v1129, 0.0
    %v1527 = vmax.f32 %v1131, 0.0
    %v1528 = vmax.f32 %v1322, 0.0
    %v1529 = vmax.f32 %v1324, 0.0
    %v1530 = vmax.f32 %v747, 0.0
    %v1531 = vmax.f32 %v749, 0.0
    %v1532 = vmax.f32 %v940, 0.0
    %v1533 = vmax.f32 %v942, 0.0
    %v1534 = vmax.f32 %v1133, 0.0
    %v1535 = vmax.f32 %v1135, 0.0
    %v1536 = vmax.f32 %v1326, 0.0
    %v1537 = vmax.f32 %v1328, 0.0
    %v1538 = vmax.f32 %v753, 0.0
    %v1539 = vmax.f32 %v755, 0.0
    %v1540 = vmax.f32 %v946, 0.0
    %v1541 = vmax.f32 %v948, 0.0
    %v1542 = vmax.f32 %v1139, 0.0
    %v1543 = vmax.f32 %v1141, 0.0
    %v1544 = vmax.f32 %v1332, 0.0
    %v1545 = vmax.f32 %v1334, 0.0
    %v1546 = vmax.f32 %v757, 0.0
    %v1547 = vmax.f32 %v759, 0.0
    %v1548 = vmax.f32 %v950, 0.0
    %v1549 = vmax.f32 %v952, 0.0
    %v1550 = vmax.f32 %v1143, 0.0
    %v1551 = vmax.f32 %v1145, 0.0
    %v1552 = vmax.f32 %v1336, 0.0
    %v1553 = vmax.f32 %v1338, 0.0
    %v1554 = vmax.f32 %v763, 0.0
    %v1555 = vmax.f32 %v765, 0.0
    %v1556 = vmax.f32 %v956, 0.0
    %v1557 = vmax.f32 %v958, 0.0
    %v1558 = vmax.f32 %v1149, 0.0
    %v1559 = vmax.f32 %v1151, 0.0
    %v1560 = vmax.f32 %v1342, 0.0
    %v1561 = vmax.f32 %v1344, 0.0
    %v1562 = vmax.f32 %v767, 0.0
    %v1563 = vmax.f32 %v769, 0.0
    %v1564 = vmax.f32 %v960, 0.0
    %v1565 = vmax.f32 %v962, 0.0
    %v1566 = vmax.f32 %v1153, 0.0
    %v1567 = vmax.f32 %v1155, 0.0
    %v1568 = vmax.f32 %v1346, 0.0
    %v1569 = vmax.f32 %v1348, 0.0
    %v1570 = vmax.f32 %v773, 0.0
    %v1571 = vmax.f32 %v775, 0.0
    %v1572 = vmax.f32 %v966, 0.0
    %v1573 = vmax.f32 %v968, 0.0
    %v1574 = vmax.f32 %v1159, 0.0
    %v1575 = vmax.f32 %v1161, 0.0
    %v1576 = vmax.f32 %v1352, 0.0
    %v1577 = vmax.f32 %v1354, 0.0
    %v1578 = vmax.f32 %v777, 0.0
    %v1579 = vmax.f32 %v779, 0.0
    %v1580 = vmax.f32 %v970, 0.0
    %v1581 = vmax.f32 %v972, 0.0
    %v1582 = vmax.f32 %v1163, 0.0
    %v1583 = vmax.f32 %v1165, 0.0
    %v1584 = vmax.f32 %v1356, 0.0
    %v1585 = vmax.f32 %v1358, 0.0
    %v1586 = vmax.f32 %v783, 0.0
    %v1587 = vmax.f32 %v785, 0.0
    %v1588 = vmax.f32 %v976, 0.0
    %v1589 = vmax.f32 %v978, 0.0
    %v1590 = vmax.f32 %v1169, 0.0
    %v1591 = vmax.f32 %v1171, 0.0
    %v1592 = vmax.f32 %v1362, 0.0
    %v1593 = vmax.f32 %v1364, 0.0
    %v1594 = vmax.f32 %v787, 0.0
    %v1595 = vmax.f32 %v789, 0.0
    %v1596 = vmax.f32 %v980, 0.0
    %v1597 = vmax.f32 %v982, 0.0
    %v1598 = vmax.f32 %v1173, 0.0
    %v1599 = vmax.f32 %v1175, 0.0
    %v1600 = vmax.f32 %v1366, 0.0
    %v1601 = vmax.f32 %v1368, 0.0
    %v1602 = vmax.f32 %v793, 0.0
    %v1603 = vmax.f32 %v795, 0.0
    %v1604 = vmax.f32 %v986, 0.0
    %v1605 = vmax.f32 %v988, 0.0
    %v1606 = vmax.f32 %v1179, 0.0
    %v1607 = vmax.f32 %v1181, 0.0
    %v1608 = vmax.f32 %v1372, 0.0
    %v1609 = vmax.f32 %v1374, 0.0
    %v1610 = vmax.f32 %v797, 0.0
    %v1611 = vmax.f32 %v799, 0.0
    %v1612 = vmax.f32 %v990, 0.0
    %v1613 = vmax.f32 %v992, 0.0
    %v1614 = vmax.f32 %v1183, 0.0
    %v1615 = vmax.f32 %v1185, 0.0
    %v1616 = vmax.f32 %v1376, 0.0
    %v1617 = vmax.f32 %v1378, 0.0
    %v1618 = vmax.f32 %v803, 0.0
    %v1619 = vmax.f32 %v805, 0.0
    %v1620 = vmax.f32 %v996, 0.0
    %v1621 = vmax.f32 %v998, 0.0
    %v1622 = vmax.f32 %v1189, 0.0
    %v1623 = vmax.f32 %v1191, 0.0
    %v1624 = vmax.f32 %v1382, 0.0
    %v1625 = vmax.f32 %v1384, 0.0
    %v1626 = vmax.f32 %v807, 0.0
    %v1627 = vmax.f32 %v809, 0.0
    %v1628 = vmax.f32 %v1000, 0.0
    %v1629 = vmax.f32 %v1002, 0.0
    %v1630 = vmax.f32 %v1193, 0.0
    %v1631 = vmax.f32 %v1195, 0.0
    %v1632 = vmax.f32 %v1386, 0.0
    %v1633 = vmax.f32 %v1388, 0.0
    %v1634 = vmax.f32 %v813, 0.0
    %v1635 = vmax.f32 %v815, 0.0
    %v1636 = vmax.f32 %v1006, 0.0
    %v1637 = vmax.f32 %v1008, 0.0
    %v1638 = vmax.f32 %v1199, 0.0
    %v1639 = vmax.f32 %v1201, 0.0
    %v1640 = vmax.f32 %v1392, 0.0
    %v1641 = vmax.f32 %v1394, 0.0
    %v1642 = vmax.f32 %v817, 0.0
    %v1643 = vmax.f32 %v819, 0.0
    %v1644 = vmax.f32 %v1010, 0.0
    %v1645 = vmax.f32 %v1012, 0.0
    %v1646 = vmax.f32 %v1203, 0.0
    %v1647 = vmax.f32 %v1205, 0.0
    %v1648 = vmax.f32 %v1396, 0.0
    %v1649 = vmax.f32 %v1398, 0.0
    %v1650 = vmax.f32 %v823, 0.0
    %v1651 = vmax.f32 %v825, 0.0
    %v1652 = vmax.f32 %v1016, 0.0
    %v1653 = vmax.f32 %v1018, 0.0
    %v1654 = vmax.f32 %v1209, 0.0
    %v1655 = vmax.f32 %v1211, 0.0
    %v1656 = vmax.f32 %v1402, 0.0
    %v1657 = vmax.f32 %v1404, 0.0
    %v1658 = vmax.f32 %v827, 0.0
    %v1659 = vmax.f32 %v829, 0.0
    %v1660 = vmax.f32 %v1020, 0.0
    %v1661 = vmax.f32 %v1022, 0.0
    %v1662 = vmax.f32 %v1213, 0.0
    %v1663 = vmax.f32 %v1215, 0.0
    %v1664 = vmax.f32 %v1406, 0.0
    %v1665 = vmax.f32 %v1408, 0.0
    %v1666 = vpack.c.bf16 %v1418, %v1410
    %v1667 = vpack.c.bf16 %v1419, %v1411
    %v1668 = vpack.c.bf16 %v1420, %v1412
    %v1669 = vpack.c.bf16 %v1421, %v1413
    %v1670 = vpack.c.bf16 %v1422, %v1414
    %v1671 = vpack.c.bf16 %v1423, %v1415
    %v1672 = vpack.c.bf16 %v1424, %v1416
    %v1673 = vpack.c.bf16 %v1425, %v1417
    %v1674 = vpack.c.bf16 %v1434, %v1426
    %v1675 = vpack.c.bf16 %v1435, %v1427
    %v1676 = vpack.c.bf16 %v1436, %v1428
    %v1677 = vpack.c.bf16 %v1437, %v1429
    %v1678 = vpack.c.bf16 %v1438, %v1430
    %v1679 = vpack.c.bf16 %v1439, %v1431
    %v1680 = vpack.c.bf16 %v1440, %v1432
    %v1681 = vpack.c.bf16 %v1441, %v1433
    %v1682 = vpack.c.bf16 %v1450, %v1442
    %v1683 = vpack.c.bf16 %v1451, %v1443
    %v1684 = vpack.c.bf16 %v1452, %v1444
    %v1685 = vpack.c.bf16 %v1453, %v1445
    %v1686 = vpack.c.bf16 %v1454, %v1446
    %v1687 = vpack.c.bf16 %v1455, %v1447
    %v1688 = vpack.c.bf16 %v1456, %v1448
    %v1689 = vpack.c.bf16 %v1457, %v1449
    %v1690 = vpack.c.bf16 %v1466, %v1458
    %v1691 = vpack.c.bf16 %v1467, %v1459
    %v1692 = vpack.c.bf16 %v1468, %v1460
    %v1693 = vpack.c.bf16 %v1469, %v1461
    %v1694 = vpack.c.bf16 %v1470, %v1462
    %v1695 = vpack.c.bf16 %v1471, %v1463
    %v1696 = vpack.c.bf16 %v1472, %v1464
    %v1697 = vpack.c.bf16 %v1473, %v1465
    %v1698 = vpack.c.bf16 %v1482, %v1474
    %v1699 = vpack.c.bf16 %v1483, %v1475
    %v1700 = vpack.c.bf16 %v1484, %v1476
    %v1701 = vpack.c.bf16 %v1485, %v1477
    %v1702 = vpack.c.bf16 %v1486, %v1478
    %v1703 = vpack.c.bf16 %v1487, %v1479
    %v1704 = vpack.c.bf16 %v1488, %v1480
    %v1705 = vpack.c.bf16 %v1489, %v1481
    %v1706 = vpack.c.bf16 %v1498, %v1490
    %v1707 = vpack.c.bf16 %v1499, %v1491
    %v1708 = vpack.c.bf16 %v1500, %v1492
    %v1709 = vpack.c.bf16 %v1501, %v1493
    %v1710 = vpack.c.bf16 %v1502, %v1494
    %v1711 = vpack.c.bf16 %v1503, %v1495
    %v1712 = vpack.c.bf16 %v1504, %v1496
    %v1713 = vpack.c.bf16 %v1505, %v1497
    %v1714 = vpack.c.bf16 %v1514, %v1506
    %v1715 = vpack.c.bf16 %v1515, %v1507
    %v1716 = vpack.c.bf16 %v1516, %v1508
    %v1717 = vpack.c.bf16 %v1517, %v1509
    %v1718 = vpack.c.bf16 %v1518, %v1510
    %v1719 = vpack.c.bf16 %v1519, %v1511
    %v1720 = vpack.c.bf16 %v1520, %v1512
    %v1721 = vpack.c.bf16 %v1521, %v1513
    %v1722 = vpack.c.bf16 %v1530, %v1522
    %v1723 = vpack.c.bf16 %v1531, %v1523
    %v1724 = vpack.c.bf16 %v1532, %v1524
    %v1725 = vpack.c.bf16 %v1533, %v1525
    %v1726 = vpack.c.bf16 %v1534, %v1526
    %v1727 = vpack.c.bf16 %v1535, %v1527
    %v1728 = vpack.c.bf16 %v1536, %v1528
    %v1729 = vpack.c.bf16 %v1537, %v1529
    %v1730 = vpack.c.bf16 %v1546, %v1538
    %v1731 = vpack.c.bf16 %v1547, %v1539
    %v1732 = vpack.c.bf16 %v1548, %v1540
    %v1733 = vpack.c.bf16 %v1549, %v1541
    %v1734 = vpack.c.bf16 %v1550, %v1542
    %v1735 = vpack.c.bf16 %v1551, %v1543
    %v1736 = vpack.c.bf16 %v1552, %v1544
    %v1737 = vpack.c.bf16 %v1553, %v1545
    %v1738 = vpack.c.bf16 %v1562, %v1554
    %v1739 = vpack.c.bf16 %v1563, %v1555
    %v1740 = vpack.c.bf16 %v1564, %v1556
    %v1741 = vpack.c.bf16 %v1565, %v1557
    %v1742 = vpack.c.bf16 %v1566, %v1558
    %v1743 = vpack.c.bf16 %v1567, %v1559
    %v1744 = vpack.c.bf16 %v1568, %v1560
    %v1745 = vpack.c.bf16 %v1569, %v1561
    %v1746 = vpack.c.bf16 %v1578, %v1570
    %v1747 = vpack.c.bf16 %v1579, %v1571
    %v1748 = vpack.c.bf16 %v1580, %v1572
    %v1749 = vpack.c.bf16 %v1581, %v1573
    %v1750 = vpack.c.bf16 %v1582, %v1574
    %v1751 = vpack.c.bf16 %v1583, %v1575
    %v1752 = vpack.c.bf16 %v1584, %v1576
    %v1753 = vpack.c.bf16 %v1585, %v1577
    %v1754 = vpack.c.bf16 %v1594, %v1586
    %v1755 = vpack.c.bf16 %v1595, %v1587
    %v1756 = vpack.c.bf16 %v1596, %v1588
    %v1757 = vpack.c.bf16 %v1597, %v1589
    %v1758 = vpack.c.bf16 %v1598, %v1590
    %v1759 = vpack.c.bf16 %v1599, %v1591
    %v1760 = vpack.c.bf16 %v1600, %v1592
    %v1761 = vpack.c.bf16 %v1601, %v1593
    %v1762 = vpack.c.bf16 %v1610, %v1602
    %v1763 = vpack.c.bf16 %v1611, %v1603
    %v1764 = vpack.c.bf16 %v1612, %v1604
    %v1765 = vpack.c.bf16 %v1613, %v1605
    %v1766 = vpack.c.bf16 %v1614, %v1606
    %v1767 = vpack.c.bf16 %v1615, %v1607
    %v1768 = vpack.c.bf16 %v1616, %v1608
    %v1769 = vpack.c.bf16 %v1617, %v1609
    %v1770 = vpack.c.bf16 %v1626, %v1618
    %v1771 = vpack.c.bf16 %v1627, %v1619
    %v1772 = vpack.c.bf16 %v1628, %v1620
    %v1773 = vpack.c.bf16 %v1629, %v1621
    %v1774 = vpack.c.bf16 %v1630, %v1622
    %v1775 = vpack.c.bf16 %v1631, %v1623
    %v1776 = vpack.c.bf16 %v1632, %v1624
    %v1777 = vpack.c.bf16 %v1633, %v1625
    %v1778 = vpack.c.bf16 %v1642, %v1634
    %v1779 = vpack.c.bf16 %v1643, %v1635
    %v1780 = vpack.c.bf16 %v1644, %v1636
    %v1781 = vpack.c.bf16 %v1645, %v1637
    %v1782 = vpack.c.bf16 %v1646, %v1638
    %v1783 = vpack.c.bf16 %v1647, %v1639
    %v1784 = vpack.c.bf16 %v1648, %v1640
    %v1785 = vpack.c.bf16 %v1649, %v1641
    %v1786 = vpack.c.bf16 %v1658, %v1650
    %v1787 = vpack.c.bf16 %v1659, %v1651
    %v1788 = vpack.c.bf16 %v1660, %v1652
    %v1789 = vpack.c.bf16 %v1661, %v1653
    %v1790 = vpack.c.bf16 %v1662, %v1654
    %v1791 = vpack.c.bf16 %v1663, %v1655
    %v1792 = vpack.c.bf16 %v1664, %v1656
    %v1793 = vpack.c.bf16 %v1665, %v1657
    %v1794 = vld [vmem:[#allocation9] sm:$0xf]
    %v1795 = vld [vmem:[#allocation9 + $0x4] sm:$0xf]
    %v1796 = vld [vmem:[#allocation9 + $0x8] sm:$0xf]
    %v1797 = vld [vmem:[#allocation9 + $0xc] sm:$0xf]
    %v1798 = vld [vmem:[#allocation9 + $0x10] sm:$0xf]
    %v1799 = vld [vmem:[#allocation9 + $0x14] sm:$0xf]
    %v1800 = vld [vmem:[#allocation9 + $0x18] sm:$0xf]
    %v1801 = vld [vmem:[#allocation9 + $0x1c] sm:$0xf]
    %v1802 = vld [vmem:[#allocation9 + $0x20] sm:$0xf]
    %v1803 = vld [vmem:[#allocation9 + $0x24] sm:$0xf]
    %v1804 = vld [vmem:[#allocation9 + $0x28] sm:$0xf]
    %v1805 = vld [vmem:[#allocation9 + $0x2c] sm:$0xf]
    %v1806 = vld [vmem:[#allocation9 + $0x30] sm:$0xf]
    %v1807 = vld [vmem:[#allocation9 + $0x34] sm:$0xf]
    %v1808 = vld [vmem:[#allocation9 + $0x38] sm:$0xf]
    %v1809 = vld [vmem:[#allocation9 + $0x3c] sm:$0xf]
    %v1810 = vld [vmem:[#allocation9 + $0x40] sm:$0xf]
    %v1811 = vld [vmem:[#allocation9 + $0x44] sm:$0xf]
    %v1812 = vld [vmem:[#allocation9 + $0x48] sm:$0xf]
    %v1813 = vld [vmem:[#allocation9 + $0x4c] sm:$0xf]
    %v1814 = vld [vmem:[#allocation9 + $0x50] sm:$0xf]
    %v1815 = vld [vmem:[#allocation9 + $0x54] sm:$0xf]
    %v1816 = vld [vmem:[#allocation9 + $0x58] sm:$0xf]
    %v1817 = vld [vmem:[#allocation9 + $0x5c] sm:$0xf]
    %v1818 = vld [vmem:[#allocation9 + $0x60] sm:$0xf]
    %v1819 = vld [vmem:[#allocation9 + $0x64] sm:$0xf]
    %v1820 = vld [vmem:[#allocation9 + $0x68] sm:$0xf]
    %v1821 = vld [vmem:[#allocation9 + $0x6c] sm:$0xf]
    %v1822 = vld [vmem:[#allocation9 + $0x70] sm:$0xf]
    %v1823 = vld [vmem:[#allocation9 + $0x74] sm:$0xf]
    %v1824 = vld [vmem:[#allocation9 + $0x78] sm:$0xf]
    %v1825 = vld [vmem:[#allocation9 + $0x7c] sm:$0xf]
    %v1826 = vld [vmem:[#allocation9 + $0x80] sm:$0xf]
    %v1827 = vld [vmem:[#allocation9 + $0x84] sm:$0xf]
    %v1828 = vld [vmem:[#allocation9 + $0x88] sm:$0xf]
    %v1829 = vld [vmem:[#allocation9 + $0x8c] sm:$0xf]
    %v1830 = vld [vmem:[#allocation9 + $0x90] sm:$0xf]
    %v1831 = vld [vmem:[#allocation9 + $0x94] sm:$0xf]
    %v1832 = vld [vmem:[#allocation9 + $0x98] sm:$0xf]
    %v1833 = vld [vmem:[#allocation9 + $0x9c] sm:$0xf]
    %v1834 = vld [vmem:[#allocation9 + $0xa0] sm:$0xf]
    %v1835 = vld [vmem:[#allocation9 + $0xa4] sm:$0xf]
    %v1836 = vld [vmem:[#allocation9 + $0xa8] sm:$0xf]
    %v1837 = vld [vmem:[#allocation9 + $0xac] sm:$0xf]
    %v1838 = vld [vmem:[#allocation9 + $0xb0] sm:$0xf]
    %v1839 = vld [vmem:[#allocation9 + $0xb4] sm:$0xf]
    %v1840 = vld [vmem:[#allocation9 + $0xb8] sm:$0xf]
    %v1841 = vld [vmem:[#allocation9 + $0xbc] sm:$0xf]
    %v1842 = vld [vmem:[#allocation9 + $0xc0] sm:$0xf]
    %v1843 = vld [vmem:[#allocation9 + $0xc4] sm:$0xf]
    %v1844 = vld [vmem:[#allocation9 + $0xc8] sm:$0xf]
    %v1845 = vld [vmem:[#allocation9 + $0xcc] sm:$0xf]
    %v1846 = vld [vmem:[#allocation9 + $0xd0] sm:$0xf]
    %v1847 = vld [vmem:[#allocation9 + $0xd4] sm:$0xf]
    %v1848 = vld [vmem:[#allocation9 + $0xd8] sm:$0xf]
    %v1849 = vld [vmem:[#allocation9 + $0xdc] sm:$0xf]
    %v1850 = vld [vmem:[#allocation9 + $0xe0] sm:$0xf]
    %v1851 = vld [vmem:[#allocation9 + $0xe4] sm:$0xf]
    %v1852 = vld [vmem:[#allocation9 + $0xe8] sm:$0xf]
    %v1853 = vld [vmem:[#allocation9 + $0xec] sm:$0xf]
    %v1854 = vld [vmem:[#allocation9 + $0xf0] sm:$0xf]
    %v1855 = vld [vmem:[#allocation9 + $0xf4] sm:$0xf]
    %v1856 = vld [vmem:[#allocation9 + $0xf8] sm:$0xf]
    %v1857 = vld [vmem:[#allocation9 + $0xfc] sm:$0xf]
    %v1858 = vld [vmem:[#allocation9 + $0x100] sm:$0xf]
    %v1859 = vld [vmem:[#allocation9 + $0x104] sm:$0xf]
    %v1860 = vld [vmem:[#allocation9 + $0x108] sm:$0xf]
    %v1861 = vld [vmem:[#allocation9 + $0x10c] sm:$0xf]
    %v1862 = vld [vmem:[#allocation9 + $0x110] sm:$0xf]
    %v1863 = vld [vmem:[#allocation9 + $0x114] sm:$0xf]
    %v1864 = vld [vmem:[#allocation9 + $0x118] sm:$0xf]
    %v1865 = vld [vmem:[#allocation9 + $0x11c] sm:$0xf]
    %v1866 = vld [vmem:[#allocation9 + $0x120] sm:$0xf]
    %v1867 = vld [vmem:[#allocation9 + $0x124] sm:$0xf]
    %v1868 = vld [vmem:[#allocation9 + $0x128] sm:$0xf]
    %v1869 = vld [vmem:[#allocation9 + $0x12c] sm:$0xf]
    %v1870 = vld [vmem:[#allocation9 + $0x130] sm:$0xf]
    %v1871 = vld [vmem:[#allocation9 + $0x134] sm:$0xf]
    %v1872 = vld [vmem:[#allocation9 + $0x138] sm:$0xf]
    %v1873 = vld [vmem:[#allocation9 + $0x13c] sm:$0xf]
    %v1874 = vld [vmem:[#allocation9 + $0x140] sm:$0xf]
    %v1875 = vld [vmem:[#allocation9 + $0x144] sm:$0xf]
    %v1876 = vld [vmem:[#allocation9 + $0x148] sm:$0xf]
    %v1877 = vld [vmem:[#allocation9 + $0x14c] sm:$0xf]
    %v1878 = vld [vmem:[#allocation9 + $0x150] sm:$0xf]
    %v1879 = vld [vmem:[#allocation9 + $0x154] sm:$0xf]
    %v1880 = vld [vmem:[#allocation9 + $0x158] sm:$0xf]
    %v1881 = vld [vmem:[#allocation9 + $0x15c] sm:$0xf]
    %v1882 = vld [vmem:[#allocation9 + $0x160] sm:$0xf]
    %v1883 = vld [vmem:[#allocation9 + $0x164] sm:$0xf]
    %v1884 = vld [vmem:[#allocation9 + $0x168] sm:$0xf]
    %v1885 = vld [vmem:[#allocation9 + $0x16c] sm:$0xf]
    %v1886 = vld [vmem:[#allocation9 + $0x170] sm:$0xf]
    %v1887 = vld [vmem:[#allocation9 + $0x174] sm:$0xf]
    %v1888 = vld [vmem:[#allocation9 + $0x178] sm:$0xf]
    %v1889 = vld [vmem:[#allocation9 + $0x17c] sm:$0xf]
    %v1890 = vld [vmem:[#allocation9 + $0x180] sm:$0xf]
    %v1891 = vld [vmem:[#allocation9 + $0x184] sm:$0xf]
    %v1892 = vld [vmem:[#allocation9 + $0x188] sm:$0xf]
    %v1893 = vld [vmem:[#allocation9 + $0x18c] sm:$0xf]
    %v1894 = vld [vmem:[#allocation9 + $0x190] sm:$0xf]
    %v1895 = vld [vmem:[#allocation9 + $0x194] sm:$0xf]
    %v1896 = vld [vmem:[#allocation9 + $0x198] sm:$0xf]
    %v1897 = vld [vmem:[#allocation9 + $0x19c] sm:$0xf]
    %v1898 = vld [vmem:[#allocation9 + $0x1a0] sm:$0xf]
    %v1899 = vld [vmem:[#allocation9 + $0x1a4] sm:$0xf]
    %v1900 = vld [vmem:[#allocation9 + $0x1a8] sm:$0xf]
    %v1901 = vld [vmem:[#allocation9 + $0x1ac] sm:$0xf]
    %v1902 = vld [vmem:[#allocation9 + $0x1b0] sm:$0xf]
    %v1903 = vld [vmem:[#allocation9 + $0x1b4] sm:$0xf]
    %v1904 = vld [vmem:[#allocation9 + $0x1b8] sm:$0xf]
    %v1905 = vld [vmem:[#allocation9 + $0x1bc] sm:$0xf]
    %v1906 = vld [vmem:[#allocation9 + $0x1c0] sm:$0xf]
    %v1907 = vld [vmem:[#allocation9 + $0x1c4] sm:$0xf]
    %v1908 = vld [vmem:[#allocation9 + $0x1c8] sm:$0xf]
    %v1909 = vld [vmem:[#allocation9 + $0x1cc] sm:$0xf]
    %v1910 = vld [vmem:[#allocation9 + $0x1d0] sm:$0xf]
    %v1911 = vld [vmem:[#allocation9 + $0x1d4] sm:$0xf]
    %v1912 = vld [vmem:[#allocation9 + $0x1d8] sm:$0xf]
    %v1913 = vld [vmem:[#allocation9 + $0x1dc] sm:$0xf]
    %v1914 = vld [vmem:[#allocation9 + $0x1e0] sm:$0xf]
    %v1915 = vld [vmem:[#allocation9 + $0x1e4] sm:$0xf]
    %v1916 = vld [vmem:[#allocation9 + $0x1e8] sm:$0xf]
    %v1917 = vld [vmem:[#allocation9 + $0x1ec] sm:$0xf]
    %v1918 = vld [vmem:[#allocation9 + $0x1f0] sm:$0xf]
    %v1919 = vld [vmem:[#allocation9 + $0x1f4] sm:$0xf]
    %v1920 = vld [vmem:[#allocation9 + $0x1f8] sm:$0xf]
    %v1921 = vld [vmem:[#allocation9 + $0x1fc] sm:$0xf]
    %v1922 = vld [vmem:[%s81] sm:$0x1]
    %v1924 = vlaneseq
    %v1925 = vshrl.u32 %v1924, 7
    %v1926 = vsub.s32 0, %v1925
    %v1927 = vrot.slane %v1922, %v1926
    %v2057 = vunpack.c.l.b16 %v1794
    %v2058 = vunpack.c.l.b16 %v1795
    %v2059 = vunpack.c.l.b16 %v1796
    %v2060 = vunpack.c.l.b16 %v1797
    %v2061 = vunpack.c.l.b16 %v1798
    %v2062 = vunpack.c.l.b16 %v1799
    %v2063 = vunpack.c.l.b16 %v1800
    %v2064 = vunpack.c.l.b16 %v1801
    %v2065 = vunpack.c.l.b16 %v1802
    %v2066 = vunpack.c.l.b16 %v1803
    %v2067 = vunpack.c.l.b16 %v1804
    %v2068 = vunpack.c.l.b16 %v1805
    %v2069 = vunpack.c.l.b16 %v1806
    %v2070 = vunpack.c.l.b16 %v1807
    %v2071 = vunpack.c.l.b16 %v1808
    %v2072 = vunpack.c.l.b16 %v1809
    %v2073 = vunpack.c.l.b16 %v1810
    %v2074 = vunpack.c.l.b16 %v1811
    %v2075 = vunpack.c.l.b16 %v1812
    %v2076 = vunpack.c.l.b16 %v1813
    %v2077 = vunpack.c.l.b16 %v1814
    %v2078 = vunpack.c.l.b16 %v1815
    %v2079 = vunpack.c.l.b16 %v1816
    %v2080 = vunpack.c.l.b16 %v1817
    %v2081 = vunpack.c.l.b16 %v1818
    %v2082 = vunpack.c.l.b16 %v1819
    %v2083 = vunpack.c.l.b16 %v1820
    %v2084 = vunpack.c.l.b16 %v1821
    %v2085 = vunpack.c.l.b16 %v1822
    %v2086 = vunpack.c.l.b16 %v1823
    %v2087 = vunpack.c.l.b16 %v1824
    %v2088 = vunpack.c.l.b16 %v1825
    %v2089 = vunpack.c.l.b16 %v1826
    %v2090 = vunpack.c.l.b16 %v1827
    %v2091 = vunpack.c.l.b16 %v1828
    %v2092 = vunpack.c.l.b16 %v1829
    %v2093 = vunpack.c.l.b16 %v1830
    %v2094 = vunpack.c.l.b16 %v1831
    %v2095 = vunpack.c.l.b16 %v1832
    %v2096 = vunpack.c.l.b16 %v1833
    %v2097 = vunpack.c.l.b16 %v1834
    %v2098 = vunpack.c.l.b16 %v1835
    %v2099 = vunpack.c.l.b16 %v1836
    %v2100 = vunpack.c.l.b16 %v1837
    %v2101 = vunpack.c.l.b16 %v1838
    %v2102 = vunpack.c.l.b16 %v1839
    %v2103 = vunpack.c.l.b16 %v1840
    %v2104 = vunpack.c.l.b16 %v1841
    %v2105 = vunpack.c.l.b16 %v1842
    %v2106 = vunpack.c.l.b16 %v1843
    %v2107 = vunpack.c.l.b16 %v1844
    %v2108 = vunpack.c.l.b16 %v1845
    %v2109 = vunpack.c.l.b16 %v1846
    %v2110 = vunpack.c.l.b16 %v1847
    %v2111 = vunpack.c.l.b16 %v1848
    %v2112 = vunpack.c.l.b16 %v1849
    %v2113 = vunpack.c.l.b16 %v1850
    %v2114 = vunpack.c.l.b16 %v1851
    %v2115 = vunpack.c.l.b16 %v1852
    %v2116 = vunpack.c.l.b16 %v1853
    %v2117 = vunpack.c.l.b16 %v1854
    %v2118 = vunpack.c.l.b16 %v1855
    %v2119 = vunpack.c.l.b16 %v1856
    %v2120 = vunpack.c.l.b16 %v1857
    %v2121 = vunpack.c.l.b16 %v1858
    %v2122 = vunpack.c.l.b16 %v1859
    %v2123 = vunpack.c.l.b16 %v1860
    %v2124 = vunpack.c.l.b16 %v1861
    %v2125 = vunpack.c.l.b16 %v1862
    %v2126 = vunpack.c.l.b16 %v1863
    %v2127 = vunpack.c.l.b16 %v1864
    %v2128 = vunpack.c.l.b16 %v1865
    %v2129 = vunpack.c.l.b16 %v1866
    %v2130 = vunpack.c.l.b16 %v1867
    %v2131 = vunpack.c.l.b16 %v1868
    %v2132 = vunpack.c.l.b16 %v1869
    %v2133 = vunpack.c.l.b16 %v1870
    %v2134 = vunpack.c.l.b16 %v1871
    %v2135 = vunpack.c.l.b16 %v1872
    %v2136 = vunpack.c.l.b16 %v1873
    %v2137 = vunpack.c.l.b16 %v1874
    %v2138 = vunpack.c.l.b16 %v1875
    %v2139 = vunpack.c.l.b16 %v1876
    %v2140 = vunpack.c.l.b16 %v1877
    %v2141 = vunpack.c.l.b16 %v1878
    %v2142 = vunpack.c.l.b16 %v1879
    %v2143 = vunpack.c.l.b16 %v1880
    %v2144 = vunpack.c.l.b16 %v1881
    %v2145 = vunpack.c.l.b16 %v1882
    %v2146 = vunpack.c.l.b16 %v1883
    %v2147 = vunpack.c.l.b16 %v1884
    %v2148 = vunpack.c.l.b16 %v1885
    %v2149 = vunpack.c.l.b16 %v1886
    %v2150 = vunpack.c.l.b16 %v1887
    %v2151 = vunpack.c.l.b16 %v1888
    %v2152 = vunpack.c.l.b16 %v1889
    %v2153 = vunpack.c.l.b16 %v1890
    %v2154 = vunpack.c.l.b16 %v1891
    %v2155 = vunpack.c.l.b16 %v1892
    %v2156 = vunpack.c.l.b16 %v1893
    %v2157 = vunpack.c.l.b16 %v1894
    %v2158 = vunpack.c.l.b16 %v1895
    %v2159 = vunpack.c.l.b16 %v1896
    %v2160 = vunpack.c.l.b16 %v1897
    %v2161 = vunpack.c.l.b16 %v1898
    %v2162 = vunpack.c.l.b16 %v1899
    %v2163 = vunpack.c.l.b16 %v1900
    %v2164 = vunpack.c.l.b16 %v1901
    %v2165 = vunpack.c.l.b16 %v1902
    %v2166 = vunpack.c.l.b16 %v1903
    %v2167 = vunpack.c.l.b16 %v1904
    %v2168 = vunpack.c.l.b16 %v1905
    %v2169 = vunpack.c.l.b16 %v1906
    %v2170 = vunpack.c.l.b16 %v1907
    %v2171 = vunpack.c.l.b16 %v1908
    %v2172 = vunpack.c.l.b16 %v1909
    %v2173 = vunpack.c.l.b16 %v1910
    %v2174 = vunpack.c.l.b16 %v1911
    %v2175 = vunpack.c.l.b16 %v1912
    %v2176 = vunpack.c.l.b16 %v1913
    %v2177 = vunpack.c.l.b16 %v1914
    %v2178 = vunpack.c.l.b16 %v1915
    %v2179 = vunpack.c.l.b16 %v1916
    %v2180 = vunpack.c.l.b16 %v1917
    %v2181 = vunpack.c.l.b16 %v1918
    %v2182 = vunpack.c.l.b16 %v1919
    %v2183 = vunpack.c.l.b16 %v1920
    %v2184 = vunpack.c.l.b16 %v1921
    %v2185 = vpack.c.b16 %v2058, %v2057
    %v2186 = vpack.c.b16 %v2060, %v2059
    %v2187 = vpack.c.b16 %v2062, %v2061
    %v2188 = vpack.c.b16 %v2064, %v2063
    %v2189 = vpack.c.b16 %v2066, %v2065
    %v2190 = vpack.c.b16 %v2068, %v2067
    %v2191 = vpack.c.b16 %v2070, %v2069
    %v2192 = vpack.c.b16 %v2072, %v2071
    %v2193 = vpack.c.b16 %v2074, %v2073
    %v2194 = vpack.c.b16 %v2076, %v2075
    %v2195 = vpack.c.b16 %v2078, %v2077
    %v2196 = vpack.c.b16 %v2080, %v2079
    %v2197 = vpack.c.b16 %v2082, %v2081
    %v2198 = vpack.c.b16 %v2084, %v2083
    %v2199 = vpack.c.b16 %v2086, %v2085
    %v2200 = vpack.c.b16 %v2088, %v2087
    %v2201 = vpack.c.b16 %v2090, %v2089
    %v2202 = vpack.c.b16 %v2092, %v2091
    %v2203 = vpack.c.b16 %v2094, %v2093
    %v2204 = vpack.c.b16 %v2096, %v2095
    %v2205 = vpack.c.b16 %v2098, %v2097
    %v2206 = vpack.c.b16 %v2100, %v2099
    %v2207 = vpack.c.b16 %v2102, %v2101
    %v2208 = vpack.c.b16 %v2104, %v2103
    %v2209 = vpack.c.b16 %v2106, %v2105
    %v2210 = vpack.c.b16 %v2108, %v2107
    %v2211 = vpack.c.b16 %v2110, %v2109
    %v2212 = vpack.c.b16 %v2112, %v2111
    %v2213 = vpack.c.b16 %v2114, %v2113
    %v2214 = vpack.c.b16 %v2116, %v2115
    %v2215 = vpack.c.b16 %v2118, %v2117
    %v2216 = vpack.c.b16 %v2120, %v2119
    %v2217 = vpack.c.b16 %v2122, %v2121
    %v2218 = vpack.c.b16 %v2124, %v2123
    %v2219 = vpack.c.b16 %v2126, %v2125
    %v2220 = vpack.c.b16 %v2128, %v2127
    %v2221 = vpack.c.b16 %v2130, %v2129
    %v2222 = vpack.c.b16 %v2132, %v2131
    %v2223 = vpack.c.b16 %v2134, %v2133
    %v2224 = vpack.c.b16 %v2136, %v2135
    %v2225 = vpack.c.b16 %v2138, %v2137
    %v2226 = vpack.c.b16 %v2140, %v2139
    %v2227 = vpack.c.b16 %v2142, %v2141
    %v2228 = vpack.c.b16 %v2144, %v2143
    %v2229 = vpack.c.b16 %v2146, %v2145
    %v2230 = vpack.c.b16 %v2148, %v2147
    %v2231 = vpack.c.b16 %v2150, %v2149
    %v2232 = vpack.c.b16 %v2152, %v2151
    %v2233 = vpack.c.b16 %v2154, %v2153
    %v2234 = vpack.c.b16 %v2156, %v2155
    %v2235 = vpack.c.b16 %v2158, %v2157
    %v2236 = vpack.c.b16 %v2160, %v2159
    %v2237 = vpack.c.b16 %v2162, %v2161
    %v2238 = vpack.c.b16 %v2164, %v2163
    %v2239 = vpack.c.b16 %v2166, %v2165
    %v2240 = vpack.c.b16 %v2168, %v2167
    %v2241 = vpack.c.b16 %v2170, %v2169
    %v2242 = vpack.c.b16 %v2172, %v2171
    %v2243 = vpack.c.b16 %v2174, %v2173
    %v2244 = vpack.c.b16 %v2176, %v2175
    %v2245 = vpack.c.b16 %v2178, %v2177
    %v2246 = vpack.c.b16 %v2180, %v2179
    %v2247 = vpack.c.b16 %v2182, %v2181
    %v2248 = vpack.c.b16 %v2184, %v2183
    %2313 = vmatprep.subr.bf16.mxu0 0
    %2314 = vmatpush1.bf16.msra.mxu0 %v2192
    %2315 = vmatprep.subr.bf16.mxu0 0
    %2316 = vmatpush1.bf16.msra.mxu0 %v2191
    %2317 = vmatprep.subr.bf16.mxu0 0
    %2318 = vmatpush1.bf16.msra.mxu0 %v2190
    %2319 = vmatprep.subr.bf16.mxu0 0
    %2320 = vmatpush1.bf16.msra.mxu0 %v2189
    %2321 = vmatprep.subr.bf16.mxu0 0
    %2322 = vmatpush1.bf16.msra.mxu0 %v2188
    %2323 = vmatprep.subr.bf16.mxu0 0
    %2324 = vmatpush1.bf16.msra.mxu0 %v2187
    %2325 = vmatprep.subr.bf16.mxu0 0
    %2326 = vmatpush1.bf16.msra.mxu0 %v2186
    %2327 = vmatprep.subr.bf16.mxu0 0
    %2328 = vmatpush1.bf16.msra.mxu0 %v2185
    %2329 = vmatprep.subr.bf16.mxu0 0
    %2330 = vmatpush2.bf16.msra.mxu0 %v2200
    %2331 = vmatprep.subr.bf16.mxu0 0
    %2332 = vmatpush2.bf16.msra.mxu0 %v2199
    %2333 = vmatprep.subr.bf16.mxu0 0
    %2334 = vmatpush2.bf16.msra.mxu0 %v2198
    %2335 = vmatprep.subr.bf16.mxu0 0
    %2336 = vmatpush2.bf16.msra.mxu0 %v2197
    %2337 = vmatprep.subr.bf16.mxu0 0
    %2338 = vmatpush2.bf16.msra.mxu0 %v2196
    %2339 = vmatprep.subr.bf16.mxu0 0
    %2340 = vmatpush2.bf16.msra.mxu0 %v2195
    %2341 = vmatprep.subr.bf16.mxu0 0
    %2342 = vmatpush2.bf16.msra.mxu0 %v2194
    %2343 = vmatprep.subr.bf16.mxu0 0
    %2344 = vmatpush2.bf16.msra.mxu0 %v2193
    %2345 = vmatprep.mubr.bf16.mxu0 %v1667
    %2346 = vmatmul.mubr.bf16.gmra.mxu0 %v1666
    %v2347 = vpop.f32.mrf.mxu0
    %v2348 = vadd.f32 %v1927, %v2347
    %v2349 = vpop.f32.mrf.mxu0
    %v2350 = vpop.f32.mrf.mxu0
    %v2351 = vadd.f32 %v1927, %v2350
    %v2352 = vpop.f32.mrf.mxu0
    %2353 = vmatprep.mubr.bf16.mxu0 %v1675
    %2354 = vmatmul.mubr.bf16.gmra.mxu0 %v1674
    %v2355 = vpop.f32.mrf.mxu0
    %v2356 = vadd.f32 %v1927, %v2355
    %v2357 = vpop.f32.mrf.mxu0
    %v2358 = vpop.f32.mrf.mxu0
    %v2359 = vadd.f32 %v1927, %v2358
    %v2360 = vpop.f32.mrf.mxu0
    %2361 = vmatprep.mubr.bf16.mxu0 %v1683
    %2362 = vmatmul.mubr.bf16.gmra.mxu0 %v1682
    %v2363 = vpop.f32.mrf.mxu0
    %v2364 = vadd.f32 %v1927, %v2363
    %v2365 = vpop.f32.mrf.mxu0
    %v2366 = vpop.f32.mrf.mxu0
    %v2367 = vadd.f32 %v1927, %v2366
    %v2368 = vpop.f32.mrf.mxu0
    %2369 = vmatprep.mubr.bf16.mxu0 %v1691
    %2370 = vmatmul.mubr.bf16.gmra.mxu0 %v1690
    %v2371 = vpop.f32.mrf.mxu0
    %v2372 = vadd.f32 %v1927, %v2371
    %v2373 = vpop.f32.mrf.mxu0
    %v2374 = vpop.f32.mrf.mxu0
    %v2375 = vadd.f32 %v1927, %v2374
    %v2376 = vpop.f32.mrf.mxu0
    %2377 = vmatprep.mubr.bf16.mxu0 %v1699
    %2378 = vmatmul.mubr.bf16.gmra.mxu0 %v1698
    %v2379 = vpop.f32.mrf.mxu0
    %v2380 = vadd.f32 %v1927, %v2379
    %v2381 = vpop.f32.mrf.mxu0
    %v2382 = vpop.f32.mrf.mxu0
    %v2383 = vadd.f32 %v1927, %v2382
    %v2384 = vpop.f32.mrf.mxu0
    %2385 = vmatprep.mubr.bf16.mxu0 %v1707
    %2386 = vmatmul.mubr.bf16.gmra.mxu0 %v1706
    %v2387 = vpop.f32.mrf.mxu0
    %v2388 = vadd.f32 %v1927, %v2387
    %v2389 = vpop.f32.mrf.mxu0
    %v2390 = vpop.f32.mrf.mxu0
    %v2391 = vadd.f32 %v1927, %v2390
    %v2392 = vpop.f32.mrf.mxu0
    %2393 = vmatprep.mubr.bf16.mxu0 %v1715
    %2394 = vmatmul.mubr.bf16.gmra.mxu0 %v1714
    %v2395 = vpop.f32.mrf.mxu0
    %v2396 = vadd.f32 %v1927, %v2395
    %v2397 = vpop.f32.mrf.mxu0
    %v2398 = vpop.f32.mrf.mxu0
    %v2399 = vadd.f32 %v1927, %v2398
    %v2400 = vpop.f32.mrf.mxu0
    %2401 = vmatprep.mubr.bf16.mxu0 %v1723
    %2402 = vmatmul.mubr.bf16.gmra.mxu0 %v1722
    %v2403 = vpop.f32.mrf.mxu0
    %v2404 = vadd.f32 %v1927, %v2403
    %v2405 = vpop.f32.mrf.mxu0
    %v2406 = vpop.f32.mrf.mxu0
    %v2407 = vadd.f32 %v1927, %v2406
    %v2408 = vpop.f32.mrf.mxu0
    %2409 = vmatprep.mubr.bf16.mxu0 %v1731
    %2410 = vmatmul.mubr.bf16.gmra.mxu0 %v1730
    %v2411 = vpop.f32.mrf.mxu0
    %v2412 = vadd.f32 %v1927, %v2411
    %v2413 = vpop.f32.mrf.mxu0
    %v2414 = vpop.f32.mrf.mxu0
    %v2415 = vadd.f32 %v1927, %v2414
    %v2416 = vpop.f32.mrf.mxu0
    %2417 = vmatprep.mubr.bf16.mxu0 %v1739
    %2418 = vmatmul.mubr.bf16.gmra.mxu0 %v1738
    %v2419 = vpop.f32.mrf.mxu0
    %v2420 = vadd.f32 %v1927, %v2419
    %v2421 = vpop.f32.mrf.mxu0
    %v2422 = vpop.f32.mrf.mxu0
    %v2423 = vadd.f32 %v1927, %v2422
    %v2424 = vpop.f32.mrf.mxu0
    %2425 = vmatprep.mubr.bf16.mxu0 %v1747
    %2426 = vmatmul.mubr.bf16.gmra.mxu0 %v1746
    %v2427 = vpop.f32.mrf.mxu0
    %v2428 = vadd.f32 %v1927, %v2427
    %v2429 = vpop.f32.mrf.mxu0
    %v2430 = vpop.f32.mrf.mxu0
    %v2431 = vadd.f32 %v1927, %v2430
    %v2432 = vpop.f32.mrf.mxu0
    %2433 = vmatprep.mubr.bf16.mxu0 %v1755
    %2434 = vmatmul.mubr.bf16.gmra.mxu0 %v1754
    %v2435 = vpop.f32.mrf.mxu0
    %v2436 = vadd.f32 %v1927, %v2435
    %v2437 = vpop.f32.mrf.mxu0
    %v2438 = vpop.f32.mrf.mxu0
    %v2439 = vadd.f32 %v1927, %v2438
    %v2440 = vpop.f32.mrf.mxu0
    %2441 = vmatprep.mubr.bf16.mxu0 %v1763
    %2442 = vmatmul.mubr.bf16.gmra.mxu0 %v1762
    %v2443 = vpop.f32.mrf.mxu0
    %v2444 = vadd.f32 %v1927, %v2443
    %v2445 = vpop.f32.mrf.mxu0
    %v2446 = vpop.f32.mrf.mxu0
    %v2447 = vadd.f32 %v1927, %v2446
    %v2448 = vpop.f32.mrf.mxu0
    %2449 = vmatprep.mubr.bf16.mxu0 %v1771
    %2450 = vmatmul.mubr.bf16.gmra.mxu0 %v1770
    %v2451 = vpop.f32.mrf.mxu0
    %v2452 = vadd.f32 %v1927, %v2451
    %v2453 = vpop.f32.mrf.mxu0
    %v2454 = vpop.f32.mrf.mxu0
    %v2455 = vadd.f32 %v1927, %v2454
    %v2456 = vpop.f32.mrf.mxu0
    %2457 = vmatprep.mubr.bf16.mxu0 %v1779
    %2458 = vmatmul.mubr.bf16.gmra.mxu0 %v1778
    %v2459 = vpop.f32.mrf.mxu0
    %v2460 = vadd.f32 %v1927, %v2459
    %v2461 = vpop.f32.mrf.mxu0
    %v2462 = vpop.f32.mrf.mxu0
    %v2463 = vadd.f32 %v1927, %v2462
    %v2464 = vpop.f32.mrf.mxu0
    %2465 = vmatprep.mubr.bf16.mxu0 %v1787
    %2466 = vmatmul.mubr.bf16.gmra.mxu0 %v1786
    %v2467 = vpop.f32.mrf.mxu0
    %v2468 = vadd.f32 %v1927, %v2467
    %v2469 = vpop.f32.mrf.mxu0
    %v2470 = vpop.f32.mrf.mxu0
    %v2471 = vadd.f32 %v1927, %v2470
    %v2472 = vpop.f32.mrf.mxu0
    %2473 = vdwg.mxu0
    %2474 = vmatprep.subr.bf16.mxu0 0
    %2475 = vmatpush1.bf16.msra.mxu0 %v2208
    %2476 = vmatprep.subr.bf16.mxu0 0
    %2477 = vmatpush1.bf16.msra.mxu0 %v2207
    %2478 = vmatprep.subr.bf16.mxu0 0
    %2479 = vmatpush1.bf16.msra.mxu0 %v2206
    %2480 = vmatprep.subr.bf16.mxu0 0
    %2481 = vmatpush1.bf16.msra.mxu0 %v2205
    %2482 = vmatprep.subr.bf16.mxu0 0
    %2483 = vmatpush1.bf16.msra.mxu0 %v2204
    %2484 = vmatprep.subr.bf16.mxu0 0
    %2485 = vmatpush1.bf16.msra.mxu0 %v2203
    %2486 = vmatprep.subr.bf16.mxu0 0
    %2487 = vmatpush1.bf16.msra.mxu0 %v2202
    %2488 = vmatprep.subr.bf16.mxu0 0
    %2489 = vmatpush1.bf16.msra.mxu0 %v2201
    %2490 = vmatprep.subr.bf16.mxu0 0
    %2491 = vmatpush2.bf16.msra.mxu0 %v2216
    %2492 = vmatprep.subr.bf16.mxu0 0
    %2493 = vmatpush2.bf16.msra.mxu0 %v2215
    %2494 = vmatprep.subr.bf16.mxu0 0
    %2495 = vmatpush2.bf16.msra.mxu0 %v2214
    %2496 = vmatprep.subr.bf16.mxu0 0
    %2497 = vmatpush2.bf16.msra.mxu0 %v2213
    %2498 = vmatprep.subr.bf16.mxu0 0
    %2499 = vmatpush2.bf16.msra.mxu0 %v2212
    %2500 = vmatprep.subr.bf16.mxu0 0
    %2501 = vmatpush2.bf16.msra.mxu0 %v2211
    %2502 = vmatprep.subr.bf16.mxu0 0
    %2503 = vmatpush2.bf16.msra.mxu0 %v2210
    %2504 = vmatprep.subr.bf16.mxu0 0
    %2505 = vmatpush2.bf16.msra.mxu0 %v2209
    %2506 = vmatprep.mubr.bf16.mxu0 %v1669
    %2507 = vmatmul.mubr.bf16.gmra.mxu0 %v1668
    %v2508 = vpop.f32.mrf.mxu0
    %v2509 = vadd.f32 %v2348, %v2508
    %v2510 = vpop.f32.mrf.mxu0
    %v2511 = vpop.f32.mrf.mxu0
    %v2512 = vadd.f32 %v2351, %v2511
    %v2513 = vpop.f32.mrf.mxu0
    %2514 = vmatprep.mubr.bf16.mxu0 %v1677
    %2515 = vmatmul.mubr.bf16.gmra.mxu0 %v1676
    %v2516 = vpop.f32.mrf.mxu0
    %v2517 = vadd.f32 %v2356, %v2516
    %v2518 = vpop.f32.mrf.mxu0
    %v2519 = vpop.f32.mrf.mxu0
    %v2520 = vadd.f32 %v2359, %v2519
    %v2521 = vpop.f32.mrf.mxu0
    %2522 = vmatprep.mubr.bf16.mxu0 %v1685
    %2523 = vmatmul.mubr.bf16.gmra.mxu0 %v1684
    %v2524 = vpop.f32.mrf.mxu0
    %v2525 = vadd.f32 %v2364, %v2524
    %v2526 = vpop.f32.mrf.mxu0
    %v2527 = vpop.f32.mrf.mxu0
    %v2528 = vadd.f32 %v2367, %v2527
    %v2529 = vpop.f32.mrf.mxu0
    %2530 = vmatprep.mubr.bf16.mxu0 %v1693
    %2531 = vmatmul.mubr.bf16.gmra.mxu0 %v1692
    %v2532 = vpop.f32.mrf.mxu0
    %v2533 = vadd.f32 %v2372, %v2532
    %v2534 = vpop.f32.mrf.mxu0
    %v2535 = vpop.f32.mrf.mxu0
    %v2536 = vadd.f32 %v2375, %v2535
    %v2537 = vpop.f32.mrf.mxu0
    %2538 = vmatprep.mubr.bf16.mxu0 %v1701
    %2539 = vmatmul.mubr.bf16.gmra.mxu0 %v1700
    %v2540 = vpop.f32.mrf.mxu0
    %v2541 = vadd.f32 %v2380, %v2540
    %v2542 = vpop.f32.mrf.mxu0
    %v2543 = vpop.f32.mrf.mxu0
    %v2544 = vadd.f32 %v2383, %v2543
    %v2545 = vpop.f32.mrf.mxu0
    %2546 = vmatprep.mubr.bf16.mxu0 %v1709
    %2547 = vmatmul.mubr.bf16.gmra.mxu0 %v1708
    %v2548 = vpop.f32.mrf.mxu0
    %v2549 = vadd.f32 %v2388, %v2548
    %v2550 = vpop.f32.mrf.mxu0
    %v2551 = vpop.f32.mrf.mxu0
    %v2552 = vadd.f32 %v2391, %v2551
    %v2553 = vpop.f32.mrf.mxu0
    %2554 = vmatprep.mubr.bf16.mxu0 %v1717
    %2555 = vmatmul.mubr.bf16.gmra.mxu0 %v1716
    %v2556 = vpop.f32.mrf.mxu0
    %v2557 = vadd.f32 %v2396, %v2556
    %v2558 = vpop.f32.mrf.mxu0
    %v2559 = vpop.f32.mrf.mxu0
    %v2560 = vadd.f32 %v2399, %v2559
    %v2561 = vpop.f32.mrf.mxu0
    %2562 = vmatprep.mubr.bf16.mxu0 %v1725
    %2563 = vmatmul.mubr.bf16.gmra.mxu0 %v1724
    %v2564 = vpop.f32.mrf.mxu0
    %v2565 = vadd.f32 %v2404, %v2564
    %v2566 = vpop.f32.mrf.mxu0
    %v2567 = vpop.f32.mrf.mxu0
    %v2568 = vadd.f32 %v2407, %v2567
    %v2569 = vpop.f32.mrf.mxu0
    %2570 = vmatprep.mubr.bf16.mxu0 %v1733
    %2571 = vmatmul.mubr.bf16.gmra.mxu0 %v1732
    %v2572 = vpop.f32.mrf.mxu0
    %v2573 = vadd.f32 %v2412, %v2572
    %v2574 = vpop.f32.mrf.mxu0
    %v2575 = vpop.f32.mrf.mxu0
    %v2576 = vadd.f32 %v2415, %v2575
    %v2577 = vpop.f32.mrf.mxu0
    %2578 = vmatprep.mubr.bf16.mxu0 %v1741
    %2579 = vmatmul.mubr.bf16.gmra.mxu0 %v1740
    %v2580 = vpop.f32.mrf.mxu0
    %v2581 = vadd.f32 %v2420, %v2580
    %v2582 = vpop.f32.mrf.mxu0
    %v2583 = vpop.f32.mrf.mxu0
    %v2584 = vadd.f32 %v2423, %v2583
    %v2585 = vpop.f32.mrf.mxu0
    %2586 = vmatprep.mubr.bf16.mxu0 %v1749
    %2587 = vmatmul.mubr.bf16.gmra.mxu0 %v1748
    %v2588 = vpop.f32.mrf.mxu0
    %v2589 = vadd.f32 %v2428, %v2588
    %v2590 = vpop.f32.mrf.mxu0
    %v2591 = vpop.f32.mrf.mxu0
    %v2592 = vadd.f32 %v2431, %v2591
    %v2593 = vpop.f32.mrf.mxu0
    %2594 = vmatprep.mubr.bf16.mxu0 %v1757
    %2595 = vmatmul.mubr.bf16.gmra.mxu0 %v1756
    %v2596 = vpop.f32.mrf.mxu0
    %v2597 = vadd.f32 %v2436, %v2596
    %v2598 = vpop.f32.mrf.mxu0
    %v2599 = vpop.f32.mrf.mxu0
    %v2600 = vadd.f32 %v2439, %v2599
    %v2601 = vpop.f32.mrf.mxu0
    %2602 = vmatprep.mubr.bf16.mxu0 %v1765
    %2603 = vmatmul.mubr.bf16.gmra.mxu0 %v1764
    %v2604 = vpop.f32.mrf.mxu0
    %v2605 = vadd.f32 %v2444, %v2604
    %v2606 = vpop.f32.mrf.mxu0
    %v2607 = vpop.f32.mrf.mxu0
    %v2608 = vadd.f32 %v2447, %v2607
    %v2609 = vpop.f32.mrf.mxu0
    %2610 = vmatprep.mubr.bf16.mxu0 %v1773
    %2611 = vmatmul.mubr.bf16.gmra.mxu0 %v1772
    %v2612 = vpop.f32.mrf.mxu0
    %v2613 = vadd.f32 %v2452, %v2612
    %v2614 = vpop.f32.mrf.mxu0
    %v2615 = vpop.f32.mrf.mxu0
    %v2616 = vadd.f32 %v2455, %v2615
    %v2617 = vpop.f32.mrf.mxu0
    %2618 = vmatprep.mubr.bf16.mxu0 %v1781
    %2619 = vmatmul.mubr.bf16.gmra.mxu0 %v1780
    %v2620 = vpop.f32.mrf.mxu0
    %v2621 = vadd.f32 %v2460, %v2620
    %v2622 = vpop.f32.mrf.mxu0
    %v2623 = vpop.f32.mrf.mxu0
    %v2624 = vadd.f32 %v2463, %v2623
    %v2625 = vpop.f32.mrf.mxu0
    %2626 = vmatprep.mubr.bf16.mxu0 %v1789
    %2627 = vmatmul.mubr.bf16.gmra.mxu0 %v1788
    %v2628 = vpop.f32.mrf.mxu0
    %v2629 = vadd.f32 %v2468, %v2628
    %v2630 = vpop.f32.mrf.mxu0
    %v2631 = vpop.f32.mrf.mxu0
    %v2632 = vadd.f32 %v2471, %v2631
    %v2633 = vpop.f32.mrf.mxu0
    %2634 = vdwg.mxu0
    %2635 = vmatprep.subr.bf16.mxu0 0
    %2636 = vmatpush1.bf16.msra.mxu0 %v2224
    %2637 = vmatprep.subr.bf16.mxu0 0
    %2638 = vmatpush1.bf16.msra.mxu0 %v2223
    %2639 = vmatprep.subr.bf16.mxu0 0
    %2640 = vmatpush1.bf16.msra.mxu0 %v2222
    %2641 = vmatprep.subr.bf16.mxu0 0
    %2642 = vmatpush1.bf16.msra.mxu0 %v2221
    %2643 = vmatprep.subr.bf16.mxu0 0
    %2644 = vmatpush1.bf16.msra.mxu0 %v2220
    %2645 = vmatprep.subr.bf16.mxu0 0
    %2646 = vmatpush1.bf16.msra.mxu0 %v2219
    %2647 = vmatprep.subr.bf16.mxu0 0
    %2648 = vmatpush1.bf16.msra.mxu0 %v2218
    %2649 = vmatprep.subr.bf16.mxu0 0
    %2650 = vmatpush1.bf16.msra.mxu0 %v2217
    %2651 = vmatprep.subr.bf16.mxu0 0
    %2652 = vmatpush2.bf16.msra.mxu0 %v2232
    %2653 = vmatprep.subr.bf16.mxu0 0
    %2654 = vmatpush2.bf16.msra.mxu0 %v2231
    %2655 = vmatprep.subr.bf16.mxu0 0
    %2656 = vmatpush2.bf16.msra.mxu0 %v2230
    %2657 = vmatprep.subr.bf16.mxu0 0
    %2658 = vmatpush2.bf16.msra.mxu0 %v2229
    %2659 = vmatprep.subr.bf16.mxu0 0
    %2660 = vmatpush2.bf16.msra.mxu0 %v2228
    %2661 = vmatprep.subr.bf16.mxu0 0
    %2662 = vmatpush2.bf16.msra.mxu0 %v2227
    %2663 = vmatprep.subr.bf16.mxu0 0
    %2664 = vmatpush2.bf16.msra.mxu0 %v2226
    %2665 = vmatprep.subr.bf16.mxu0 0
    %2666 = vmatpush2.bf16.msra.mxu0 %v2225
    %2667 = vmatprep.mubr.bf16.mxu0 %v1671
    %2668 = vmatmul.mubr.bf16.gmra.mxu0 %v1670
    %v2669 = vpop.f32.mrf.mxu0
    %v2670 = vadd.f32 %v2509, %v2669
    %v2671 = vpop.f32.mrf.mxu0
    %v2672 = vpop.f32.mrf.mxu0
    %v2673 = vadd.f32 %v2512, %v2672
    %v2674 = vpop.f32.mrf.mxu0
    %2675 = vmatprep.mubr.bf16.mxu0 %v1679
    %2676 = vmatmul.mubr.bf16.gmra.mxu0 %v1678
    %v2677 = vpop.f32.mrf.mxu0
    %v2678 = vadd.f32 %v2517, %v2677
    %v2679 = vpop.f32.mrf.mxu0
    %v2680 = vpop.f32.mrf.mxu0
    %v2681 = vadd.f32 %v2520, %v2680
    %v2682 = vpop.f32.mrf.mxu0
    %2683 = vmatprep.mubr.bf16.mxu0 %v1687
    %2684 = vmatmul.mubr.bf16.gmra.mxu0 %v1686
    %v2685 = vpop.f32.mrf.mxu0
    %v2686 = vadd.f32 %v2525, %v2685
    %v2687 = vpop.f32.mrf.mxu0
    %v2688 = vpop.f32.mrf.mxu0
    %v2689 = vadd.f32 %v2528, %v2688
    %v2690 = vpop.f32.mrf.mxu0
    %2691 = vmatprep.mubr.bf16.mxu0 %v1695
    %2692 = vmatmul.mubr.bf16.gmra.mxu0 %v1694
    %v2693 = vpop.f32.mrf.mxu0
    %v2694 = vadd.f32 %v2533, %v2693
    %v2695 = vpop.f32.mrf.mxu0
    %v2696 = vpop.f32.mrf.mxu0
    %v2697 = vadd.f32 %v2536, %v2696
    %v2698 = vpop.f32.mrf.mxu0
    %2699 = vmatprep.mubr.bf16.mxu0 %v1703
    %2700 = vmatmul.mubr.bf16.gmra.mxu0 %v1702
    %v2701 = vpop.f32.mrf.mxu0
    %v2702 = vadd.f32 %v2541, %v2701
    %v2703 = vpop.f32.mrf.mxu0
    %v2704 = vpop.f32.mrf.mxu0
    %v2705 = vadd.f32 %v2544, %v2704
    %v2706 = vpop.f32.mrf.mxu0
    %2707 = vmatprep.mubr.bf16.mxu0 %v1711
    %2708 = vmatmul.mubr.bf16.gmra.mxu0 %v1710
    %v2709 = vpop.f32.mrf.mxu0
    %v2710 = vadd.f32 %v2549, %v2709
    %v2711 = vpop.f32.mrf.mxu0
    %v2712 = vpop.f32.mrf.mxu0
    %v2713 = vadd.f32 %v2552, %v2712
    %v2714 = vpop.f32.mrf.mxu0
    %2715 = vmatprep.mubr.bf16.mxu0 %v1719
    %2716 = vmatmul.mubr.bf16.gmra.mxu0 %v1718
    %v2717 = vpop.f32.mrf.mxu0
    %v2718 = vadd.f32 %v2557, %v2717
    %v2719 = vpop.f32.mrf.mxu0
    %v2720 = vpop.f32.mrf.mxu0
    %v2721 = vadd.f32 %v2560, %v2720
    %v2722 = vpop.f32.mrf.mxu0
    %2723 = vmatprep.mubr.bf16.mxu0 %v1727
    %2724 = vmatmul.mubr.bf16.gmra.mxu0 %v1726
    %v2725 = vpop.f32.mrf.mxu0
    %v2726 = vadd.f32 %v2565, %v2725
    %v2727 = vpop.f32.mrf.mxu0
    %v2728 = vpop.f32.mrf.mxu0
    %v2729 = vadd.f32 %v2568, %v2728
    %v2730 = vpop.f32.mrf.mxu0
    %2731 = vmatprep.mubr.bf16.mxu0 %v1735
    %2732 = vmatmul.mubr.bf16.gmra.mxu0 %v1734
    %v2733 = vpop.f32.mrf.mxu0
    %v2734 = vadd.f32 %v2573, %v2733
    %v2735 = vpop.f32.mrf.mxu0
    %v2736 = vpop.f32.mrf.mxu0
    %v2737 = vadd.f32 %v2576, %v2736
    %v2738 = vpop.f32.mrf.mxu0
    %2739 = vmatprep.mubr.bf16.mxu0 %v1743
    %2740 = vmatmul.mubr.bf16.gmra.mxu0 %v1742
    %v2741 = vpop.f32.mrf.mxu0
    %v2742 = vadd.f32 %v2581, %v2741
    %v2743 = vpop.f32.mrf.mxu0
    %v2744 = vpop.f32.mrf.mxu0
    %v2745 = vadd.f32 %v2584, %v2744
    %v2746 = vpop.f32.mrf.mxu0
    %2747 = vmatprep.mubr.bf16.mxu0 %v1751
    %2748 = vmatmul.mubr.bf16.gmra.mxu0 %v1750
    %v2749 = vpop.f32.mrf.mxu0
    %v2750 = vadd.f32 %v2589, %v2749
    %v2751 = vpop.f32.mrf.mxu0
    %v2752 = vpop.f32.mrf.mxu0
    %v2753 = vadd.f32 %v2592, %v2752
    %v2754 = vpop.f32.mrf.mxu0
    %2755 = vmatprep.mubr.bf16.mxu0 %v1759
    %2756 = vmatmul.mubr.bf16.gmra.mxu0 %v1758
    %v2757 = vpop.f32.mrf.mxu0
    %v2758 = vadd.f32 %v2597, %v2757
    %v2759 = vpop.f32.mrf.mxu0
    %v2760 = vpop.f32.mrf.mxu0
    %v2761 = vadd.f32 %v2600, %v2760
    %v2762 = vpop.f32.mrf.mxu0
    %2763 = vmatprep.mubr.bf16.mxu0 %v1767
    %2764 = vmatmul.mubr.bf16.gmra.mxu0 %v1766
    %v2765 = vpop.f32.mrf.mxu0
    %v2766 = vadd.f32 %v2605, %v2765
    %v2767 = vpop.f32.mrf.mxu0
    %v2768 = vpop.f32.mrf.mxu0
    %v2769 = vadd.f32 %v2608, %v2768
    %v2770 = vpop.f32.mrf.mxu0
    %2771 = vmatprep.mubr.bf16.mxu0 %v1775
    %2772 = vmatmul.mubr.bf16.gmra.mxu0 %v1774
    %v2773 = vpop.f32.mrf.mxu0
    %v2774 = vadd.f32 %v2613, %v2773
    %v2775 = vpop.f32.mrf.mxu0
    %v2776 = vpop.f32.mrf.mxu0
    %v2777 = vadd.f32 %v2616, %v2776
    %v2778 = vpop.f32.mrf.mxu0
    %2779 = vmatprep.mubr.bf16.mxu0 %v1783
    %2780 = vmatmul.mubr.bf16.gmra.mxu0 %v1782
    %v2781 = vpop.f32.mrf.mxu0
    %v2782 = vadd.f32 %v2621, %v2781
    %v2783 = vpop.f32.mrf.mxu0
    %v2784 = vpop.f32.mrf.mxu0
    %v2785 = vadd.f32 %v2624, %v2784
    %v2786 = vpop.f32.mrf.mxu0
    %2787 = vmatprep.mubr.bf16.mxu0 %v1791
    %2788 = vmatmul.mubr.bf16.gmra.mxu0 %v1790
    %v2789 = vpop.f32.mrf.mxu0
    %v2790 = vadd.f32 %v2629, %v2789
    %v2791 = vpop.f32.mrf.mxu0
    %v2792 = vpop.f32.mrf.mxu0
    %v2793 = vadd.f32 %v2632, %v2792
    %v2794 = vpop.f32.mrf.mxu0
    %2795 = vdwg.mxu0
    %2796 = vmatprep.subr.bf16.mxu0 0
    %2797 = vmatpush1.bf16.msra.mxu0 %v2240
    %2798 = vmatprep.subr.bf16.mxu0 0
    %2799 = vmatpush1.bf16.msra.mxu0 %v2239
    %2800 = vmatprep.subr.bf16.mxu0 0
    %2801 = vmatpush1.bf16.msra.mxu0 %v2238
    %2802 = vmatprep.subr.bf16.mxu0 0
    %2803 = vmatpush1.bf16.msra.mxu0 %v2237
    %2804 = vmatprep.subr.bf16.mxu0 0
    %2805 = vmatpush1.bf16.msra.mxu0 %v2236
    %2806 = vmatprep.subr.bf16.mxu0 0
    %2807 = vmatpush1.bf16.msra.mxu0 %v2235
    %2808 = vmatprep.subr.bf16.mxu0 0
    %2809 = vmatpush1.bf16.msra.mxu0 %v2234
    %2810 = vmatprep.subr.bf16.mxu0 0
    %2811 = vmatpush1.bf16.msra.mxu0 %v2233
    %2812 = vmatprep.subr.bf16.mxu0 0
    %2813 = vmatpush2.bf16.msra.mxu0 %v2248
    %2814 = vmatprep.subr.bf16.mxu0 0
    %2815 = vmatpush2.bf16.msra.mxu0 %v2247
    %2816 = vmatprep.subr.bf16.mxu0 0
    %2817 = vmatpush2.bf16.msra.mxu0 %v2246
    %2818 = vmatprep.subr.bf16.mxu0 0
    %2819 = vmatpush2.bf16.msra.mxu0 %v2245
    %2820 = vmatprep.subr.bf16.mxu0 0
    %2821 = vmatpush2.bf16.msra.mxu0 %v2244
    %2822 = vmatprep.subr.bf16.mxu0 0
    %2823 = vmatpush2.bf16.msra.mxu0 %v2243
    %2824 = vmatprep.subr.bf16.mxu0 0
    %2825 = vmatpush2.bf16.msra.mxu0 %v2242
    %2826 = vmatprep.subr.bf16.mxu0 0
    %2827 = vmatpush2.bf16.msra.mxu0 %v2241
    %2828 = vmatprep.mubr.bf16.mxu0 %v1673
    %2829 = vmatmul.mubr.bf16.gmra.mxu0 %v1672
    %v2830 = vpop.f32.mrf.mxu0
    %v2831 = vadd.f32 %v2670, %v2830
    %v2832 = vpop.f32.mrf.mxu0
    %v2833 = vpop.f32.mrf.mxu0
    %v2834 = vadd.f32 %v2673, %v2833
    %v2835 = vpop.f32.mrf.mxu0
    %2836 = vmatprep.mubr.bf16.mxu0 %v1681
    %2837 = vmatmul.mubr.bf16.gmra.mxu0 %v1680
    %v2838 = vpop.f32.mrf.mxu0
    %v2839 = vadd.f32 %v2678, %v2838
    %v2840 = vpop.f32.mrf.mxu0
    %v2841 = vpop.f32.mrf.mxu0
    %v2842 = vadd.f32 %v2681, %v2841
    %v2843 = vpop.f32.mrf.mxu0
    %2844 = vmatprep.mubr.bf16.mxu0 %v1689
    %2845 = vmatmul.mubr.bf16.gmra.mxu0 %v1688
    %v2846 = vpop.f32.mrf.mxu0
    %v2847 = vadd.f32 %v2686, %v2846
    %v2848 = vpop.f32.mrf.mxu0
    %v2849 = vpop.f32.mrf.mxu0
    %v2850 = vadd.f32 %v2689, %v2849
    %v2851 = vpop.f32.mrf.mxu0
    %2852 = vmatprep.mubr.bf16.mxu0 %v1697
    %2853 = vmatmul.mubr.bf16.gmra.mxu0 %v1696
    %v2854 = vpop.f32.mrf.mxu0
    %v2855 = vadd.f32 %v2694, %v2854
    %v2856 = vpop.f32.mrf.mxu0
    %v2857 = vpop.f32.mrf.mxu0
    %v2858 = vadd.f32 %v2697, %v2857
    %v2859 = vpop.f32.mrf.mxu0
    %2860 = vmatprep.mubr.bf16.mxu0 %v1705
    %2861 = vmatmul.mubr.bf16.gmra.mxu0 %v1704
    %v2862 = vpop.f32.mrf.mxu0
    %v2863 = vadd.f32 %v2702, %v2862
    %v2864 = vpop.f32.mrf.mxu0
    %v2865 = vpop.f32.mrf.mxu0
    %v2866 = vadd.f32 %v2705, %v2865
    %v2867 = vpop.f32.mrf.mxu0
    %2868 = vmatprep.mubr.bf16.mxu0 %v1713
    %2869 = vmatmul.mubr.bf16.gmra.mxu0 %v1712
    %v2870 = vpop.f32.mrf.mxu0
    %v2871 = vadd.f32 %v2710, %v2870
    %v2872 = vpop.f32.mrf.mxu0
    %v2873 = vpop.f32.mrf.mxu0
    %v2874 = vadd.f32 %v2713, %v2873
    %v2875 = vpop.f32.mrf.mxu0
    %2876 = vmatprep.mubr.bf16.mxu0 %v1721
    %2877 = vmatmul.mubr.bf16.gmra.mxu0 %v1720
    %v2878 = vpop.f32.mrf.mxu0
    %v2879 = vadd.f32 %v2718, %v2878
    %v2880 = vpop.f32.mrf.mxu0
    %v2881 = vpop.f32.mrf.mxu0
    %v2882 = vadd.f32 %v2721, %v2881
    %v2883 = vpop.f32.mrf.mxu0
    %2884 = vmatprep.mubr.bf16.mxu0 %v1729
    %2885 = vmatmul.mubr.bf16.gmra.mxu0 %v1728
    %v2886 = vpop.f32.mrf.mxu0
    %v2887 = vadd.f32 %v2726, %v2886
    %v2888 = vpop.f32.mrf.mxu0
    %v2889 = vpop.f32.mrf.mxu0
    %v2890 = vadd.f32 %v2729, %v2889
    %v2891 = vpop.f32.mrf.mxu0
    %2892 = vmatprep.mubr.bf16.mxu0 %v1737
    %2893 = vmatmul.mubr.bf16.gmra.mxu0 %v1736
    %v2894 = vpop.f32.mrf.mxu0
    %v2895 = vadd.f32 %v2734, %v2894
    %v2896 = vpop.f32.mrf.mxu0
    %v2897 = vpop.f32.mrf.mxu0
    %v2898 = vadd.f32 %v2737, %v2897
    %v2899 = vpop.f32.mrf.mxu0
    %2900 = vmatprep.mubr.bf16.mxu0 %v1745
    %2901 = vmatmul.mubr.bf16.gmra.mxu0 %v1744
    %v2902 = vpop.f32.mrf.mxu0
    %v2903 = vadd.f32 %v2742, %v2902
    %v2904 = vpop.f32.mrf.mxu0
    %v2905 = vpop.f32.mrf.mxu0
    %v2906 = vadd.f32 %v2745, %v2905
    %v2907 = vpop.f32.mrf.mxu0
    %2908 = vmatprep.mubr.bf16.mxu0 %v1753
    %2909 = vmatmul.mubr.bf16.gmra.mxu0 %v1752
    %v2910 = vpop.f32.mrf.mxu0
    %v2911 = vadd.f32 %v2750, %v2910
    %v2912 = vpop.f32.mrf.mxu0
    %v2913 = vpop.f32.mrf.mxu0
    %v2914 = vadd.f32 %v2753, %v2913
    %v2915 = vpop.f32.mrf.mxu0
    %2916 = vmatprep.mubr.bf16.mxu0 %v1761
    %2917 = vmatmul.mubr.bf16.gmra.mxu0 %v1760
    %v2918 = vpop.f32.mrf.mxu0
    %v2919 = vadd.f32 %v2758, %v2918
    %v2920 = vpop.f32.mrf.mxu0
    %v2921 = vpop.f32.mrf.mxu0
    %v2922 = vadd.f32 %v2761, %v2921
    %v2923 = vpop.f32.mrf.mxu0
    %2924 = vmatprep.mubr.bf16.mxu0 %v1769
    %2925 = vmatmul.mubr.bf16.gmra.mxu0 %v1768
    %v2926 = vpop.f32.mrf.mxu0
    %v2927 = vadd.f32 %v2766, %v2926
    %v2928 = vpop.f32.mrf.mxu0
    %v2929 = vpop.f32.mrf.mxu0
    %v2930 = vadd.f32 %v2769, %v2929
    %v2931 = vpop.f32.mrf.mxu0
    %2932 = vmatprep.mubr.bf16.mxu0 %v1777
    %2933 = vmatmul.mubr.bf16.gmra.mxu0 %v1776
    %v2934 = vpop.f32.mrf.mxu0
    %v2935 = vadd.f32 %v2774, %v2934
    %v2936 = vpop.f32.mrf.mxu0
    %v2937 = vpop.f32.mrf.mxu0
    %v2938 = vadd.f32 %v2777, %v2937
    %v2939 = vpop.f32.mrf.mxu0
    %2940 = vmatprep.mubr.bf16.mxu0 %v1785
    %2941 = vmatmul.mubr.bf16.gmra.mxu0 %v1784
    %v2942 = vpop.f32.mrf.mxu0
    %v2943 = vadd.f32 %v2782, %v2942
    %v2944 = vpop.f32.mrf.mxu0
    %v2945 = vpop.f32.mrf.mxu0
    %v2946 = vadd.f32 %v2785, %v2945
    %v2947 = vpop.f32.mrf.mxu0
    %2948 = vmatprep.mubr.bf16.mxu0 %v1793
    %2949 = vmatmul.mubr.bf16.gmra.mxu0 %v1792
    %v2950 = vpop.f32.mrf.mxu0
    %v2951 = vadd.f32 %v2790, %v2950
    %v2952 = vpop.f32.mrf.mxu0
    %v2953 = vpop.f32.mrf.mxu0
    %v2954 = vadd.f32 %v2793, %v2953
    %v2955 = vpop.f32.mrf.mxu0
    %2956 = vdwg.mxu0
    %2957 = vst [vmem:[#allocation10] sm:$0xff] %v2831
    %2958 = vst [vmem:[#allocation10 + $0x8] sm:$0xff] %v2834
    %2959 = vst [vmem:[#allocation10 + $0x10] sm:$0xff] %v2839
    %2960 = vst [vmem:[#allocation10 + $0x18] sm:$0xff] %v2842
    %2961 = vst [vmem:[#allocation10 + $0x20] sm:$0xff] %v2847
    %2962 = vst [vmem:[#allocation10 + $0x28] sm:$0xff] %v2850
    %2963 = vst [vmem:[#allocation10 + $0x30] sm:$0xff] %v2855
    %2964 = vst [vmem:[#allocation10 + $0x38] sm:$0xff] %v2858
    %2965 = vst [vmem:[#allocation10 + $0x40] sm:$0xff] %v2863
    %2966 = vst [vmem:[#allocation10 + $0x48] sm:$0xff] %v2866
    %2967 = vst [vmem:[#allocation10 + $0x50] sm:$0xff] %v2871
    %2968 = vst [vmem:[#allocation10 + $0x58] sm:$0xff] %v2874
    %2969 = vst [vmem:[#allocation10 + $0x60] sm:$0xff] %v2879
    %2970 = vst [vmem:[#allocation10 + $0x68] sm:$0xff] %v2882
    %2971 = vst [vmem:[#allocation10 + $0x70] sm:$0xff] %v2887
    %2972 = vst [vmem:[#allocation10 + $0x78] sm:$0xff] %v2890
    %2973 = vst [vmem:[#allocation10 + $0x80] sm:$0xff] %v2895
    %2974 = vst [vmem:[#allocation10 + $0x88] sm:$0xff] %v2898
    %2975 = vst [vmem:[#allocation10 + $0x90] sm:$0xff] %v2903
    %2976 = vst [vmem:[#allocation10 + $0x98] sm:$0xff] %v2906
    %2977 = vst [vmem:[#allocation10 + $0xa0] sm:$0xff] %v2911
    %2978 = vst [vmem:[#allocation10 + $0xa8] sm:$0xff] %v2914
    %2979 = vst [vmem:[#allocation10 + $0xb0] sm:$0xff] %v2919
    %2980 = vst [vmem:[#allocation10 + $0xb8] sm:$0xff] %v2922
    %2981 = vst [vmem:[#allocation10 + $0xc0] sm:$0xff] %v2927
    %2982 = vst [vmem:[#allocation10 + $0xc8] sm:$0xff] %v2930
    %2983 = vst [vmem:[#allocation10 + $0xd0] sm:$0xff] %v2935
    %2984 = vst [vmem:[#allocation10 + $0xd8] sm:$0xff] %v2938
    %2985 = vst [vmem:[#allocation10 + $0xe0] sm:$0xff] %v2943
    %2986 = vst [vmem:[#allocation10 + $0xe8] sm:$0xff] %v2946
    %2987 = vst [vmem:[#allocation10 + $0xf0] sm:$0xff] %v2951
    %2988 = vst [vmem:[#allocation10 + $0xf8] sm:$0xff] %v2954
    // Predicated region
    $region34: #{manager_forward.1} parent=1 // pred_check
      _
    $region35: #{manager_forward.1} parent=1 // pred_check_branch
      %2990 = sbr.rel (0) target = $region37
    $region36: #{manager_forward.1} parent=1 // pred_region
      %s2992 = ssub.s32 4096, 4096
      %2993 = vsyncadd [#allocation6], %s2992
      %s2994 = sshll.u32 [#allocation10], 4
      %s2995 = int_to_ptr.vmem [resolvable:$true] %s2994
      %3000 = dma.vmem_to_hbm [thread:$0]  %s2995, 4096, %s6, [#allocation6], 128, 128, 8
    $region37: #{manager_forward.1} parent=1 // pred_fallthru
      _
    // Predicated region
    $region38: #{manager_forward.1} parent=1 // pred_check
      _
    $region39: #{manager_forward.1} parent=1 // pred_check_branch
      %3002 = sbr.rel (0) target = $region41
    $region40: #{manager_forward.1} parent=1 // pred_region
      %3003 = dma.done [#allocation6], 4096
    $region41: #{manager_forward.1} parent=1 // pred_fallthru
      _
    %3004 = vsyncpa [#allocation5], 1
    %3005 = vsyncpa [#allocation8], 1
    %3006 = vsyncpa [#allocation6], 1

</llo_original>
